<compile_context>
chip_gen: v7x
topology: tpu7x:2x2x1
jax: 0.10.0
libtpu: 0.0.40
codegen_flags: <defaults>
</compile_context>

<pallas_src>
import functools

import jax
import jax.numpy as jnp
from jax.experimental import pallas as pl
from jax.experimental.pallas import tpu as pltpu


# ----------------------------- in-kernel math helpers -----------------------------

_GELU_C = 0.7978845608028654  # sqrt(2/pi)


def _gelu_tanh(x):
    # tanh-form GELU (== torch F.gelu(approximate='tanh')); tanh lowers to the EUP
    # slot so the matmul epilogue stays cheap on the VALU.  Differs from exact erf
    # GELU by <4e-3 absolute, below bf16 storage precision.
    return 0.5 * x * (1.0 + jnp.tanh(_GELU_C * (x + 0.044715 * (x * x * x))))


# ----------------------------- row-tiled linear (lm_proj) -----------------------------

def _linear_bias_kernel(x_ref, w_ref, b_ref, o_ref):
    acc = jnp.dot(x_ref[...], w_ref[...], preferred_element_type=jnp.float32)
    o_ref[...] = (acc + b_ref[...]).astype(o_ref.dtype)


def linear_bias(x, w, b, *, tile_m=1024):
    """y = x @ w + b.  x:(M,K) bf16, w:(K,N) bf16, b:(N,) f32 (f32 accumulation).

    Tiled + software-pipelined over M rows; weights/bias kept at a constant block
    index (resident in VMEM across the grid)."""
    M, K = x.shape
    N = w.shape[1]
    tm = M if M <= tile_m else tile_m
    grid = (pl.cdiv(M, tm),)
    itm = jnp.dtype(x.dtype).itemsize
    cost = pl.CostEstimate(
        flops=2 * M * K * N,
        transcendentals=0,
        bytes_accessed=M * K * itm + K * N * itm + N * 4 + M * N * itm)
    return pl.pallas_call(
        _linear_bias_kernel,
        out_shape=jax.ShapeDtypeStruct((M, N), x.dtype),
        grid=grid,
        in_specs=[pl.BlockSpec((tm, K), lambda i: (i, 0)),
                  pl.BlockSpec((K, N), lambda i: (0, 0)),
                  pl.BlockSpec((1, N), lambda i: (0, 0))],
        out_specs=pl.BlockSpec((tm, N), lambda i: (i, 0)),
        compiler_params=pltpu.CompilerParams(
            dimension_semantics=("parallel",),
            vmem_limit_bytes=64 << 20),
        cost_estimate=cost,
    )(x, w, b.reshape(1, N).astype(jnp.float32))


# ----------------------------- fused vid_sum + vid_env kernel -----------------------------

def _vid_sum_env_kernel(tile_t,
                        x_ref, wg_ref, bg_ref, m_ref, env_ref,
                        w1_ref, w2_ref, bs_ref, wev_ref, wee_ref, be_ref,
                        o_ref):
    # One (batch, t-tile) per grid step.  x stays full-length (T, D) and lane-dense;
    # the time contraction is a straight (tile_t, T) @ (T, D) MXU matmul — no
    # transposes, no pad, no (B, 600, D) intermediate.
    x_all = x_ref[0]                                               # (T, D) bf16
    T = x_ref.shape[1]
    if tile_t == T:
        x_tile = x_all                                             # single t-tile
    else:
        t0 = pl.multiple_of(pl.program_id(1) * tile_t, 8)          # tile_t % 8 == 0
        x_tile = x_ref[0, pl.ds(t0, tile_t), :]                    # (tile_t, D) bf16

    # fused vid_t_proj + zero-pad + nearest-interp (folded into wg/bg) + v_mask
    interp = jnp.dot(wg_ref[...], x_all, preferred_element_type=jnp.float32)
    interp = (interp + bg_ref[...]) * m_ref[0]                     # (tile_t, D) f32

    # vid_sum_proj over concat([x, interp], -1) without materializing the concat
    acc = jnp.dot(x_tile, w1_ref[...], preferred_element_type=jnp.float32)
    acc = acc + jnp.dot(interp.astype(x_tile.dtype), w2_ref[...],
                        preferred_element_type=jnp.float32)
    acc = acc + bs_ref[...]
    h = x_tile.astype(jnp.float32) + _gelu_tanh(acc)               # enc_v after vid_sum

    # vid_env stage fused in the epilogue: concat([h, env], -1) @ W_env + b, GELU, residual
    acc2 = jnp.dot(h.astype(x_tile.dtype), wev_ref[...],
                   preferred_element_type=jnp.float32)
    acc2 = acc2 + jnp.dot(env_ref[0], wee_ref[...],
                          preferred_element_type=jnp.float32)
    acc2 = acc2 + be_ref[...]
    o_ref[0] = (h + _gelu_tanh(acc2)).astype(o_ref.dtype)


def _pick_time_tile(T, max_tile):
    """Largest divisor of T that is <= max_tile and a multiple of 8; else T."""
    if T <= max_tile:
        return T
    for cand in range(max_tile, 7, -1):
        if T % cand == 0 and cand % 8 == 0:
            return cand
    return T


def vid_sum_env_fused(x, wg_t, bg, mask, env_i, w1, w2, b_sum, we_v, we_e, b_env,
                      *, max_tile_t=256):
    """Fused vid_sum + vid_env stages (one HBM read + one HBM write of enc_v).

    x      : (B, T, D) bf16   encoder_out_v
    wg_t   : (T, T)    bf16   W_eff[t_out, t_in] = vid_t_proj.W[t_in, idx(t_out)]
    bg     : (T, 1)    f32    vid_t_proj.b[idx(t_out)]
    mask   : (B, T, 1) f32    v_mask
    env_i  : (B, T, E) bf16   nearest-interpolated env features
    w1, w2 : (D, D)    bf16   row-split of vid_sum_proj weight (enc_v / interp parts)
    we_v   : (D, D)    bf16   row-split of vid_env_proj weight (enc_v part)
    we_e   : (E, D)    bf16   row-split of vid_env_proj weight (env part)
    b_sum, b_env : (D,) f32
    """
    B, T, D = x.shape
    E = env_i.shape[-1]
    tile_t = _pick_time_tile(T, max_tile_t)
    nt = T // tile_t
    itm = jnp.dtype(x.dtype).itemsize
    cost = pl.CostEstimate(
        flops=2 * B * T * T * D + 6 * B * T * D * D + 2 * B * T * E * D,
        transcendentals=2 * B * T * D,
        bytes_accessed=(2 * B * T * D + B * T * E + T * T + 3 * D * D + E * D) * itm
                       + (T + B * T + 2 * D) * 4)
    kernel = functools.partial(_vid_sum_env_kernel, tile_t)
    return pl.pallas_call(
        kernel,
        out_shape=jax.ShapeDtypeStruct((B, T, D), x.dtype),
        grid=(B, nt),
        in_specs=[
            pl.BlockSpec((1, T, D), lambda b, t: (b, 0, 0)),       # x, resident per batch
            pl.BlockSpec((tile_t, T), lambda b, t: (t, 0)),        # wg (t-sliced)
            pl.BlockSpec((tile_t, 1), lambda b, t: (t, 0)),        # bg
            pl.BlockSpec((1, tile_t, 1), lambda b, t: (b, t, 0)),  # v_mask
            pl.BlockSpec((1, tile_t, E), lambda b, t: (b, t, 0)),  # env features
            pl.BlockSpec((D, D), lambda b, t: (0, 0)),             # vid_sum W (x part)
            pl.BlockSpec((D, D), lambda b, t: (0, 0)),             # vid_sum W (interp part)
            pl.BlockSpec((1, D), lambda b, t: (0, 0)),             # vid_sum bias
            pl.BlockSpec((D, D), lambda b, t: (0, 0)),             # vid_env W (enc_v part)
            pl.BlockSpec((E, D), lambda b, t: (0, 0)),             # vid_env W (env part)
            pl.BlockSpec((1, D), lambda b, t: (0, 0)),             # vid_env bias
        ],
        out_specs=pl.BlockSpec((1, tile_t, D), lambda b, t: (b, t, 0)),
        compiler_params=pltpu.CompilerParams(
            dimension_semantics=("parallel", "parallel"),
            vmem_limit_bytes=64 << 20),
        cost_estimate=cost,
    )(x, wg_t, bg.astype(jnp.float32), mask, env_i, w1, w2,
      b_sum.reshape(1, D).astype(jnp.float32),
      we_v, we_e,
      b_env.reshape(1, D).astype(jnp.float32))


# ----------------------------- params -----------------------------

def init_params(key, input_dim=32, lm_dim=64, env_dim=16, vocab=100):
    ks = jax.random.split(key, 10)

    def lin(kw, kb, fan_in, fan_out):
        bound = 1.0 / (fan_in ** 0.5)
        w = jax.random.uniform(kw, (fan_in, fan_out), jnp.float32, -bound, bound)
        b = jax.random.uniform(kb, (fan_out,), jnp.float32, -bound, bound)
        return w, b

    p = {}
    p["lm_proj_w"], p["lm_proj_b"] = lin(ks[0], ks[1], input_dim, lm_dim)
    p["v_emb"] = jax.random.normal(ks[2], (lm_dim,), jnp.float32)      # nn.Parameter (1,1,lm_dim)
    p["embed_tokens"] = jax.random.normal(ks[3], (vocab, lm_dim), jnp.float32)
    p["vid_t_proj_w"], p["vid_t_proj_b"] = lin(ks[4], ks[5], 1200, 600)
    # Single nn.Linear(2*lm_dim, lm_dim) / nn.Linear(env+lm_dim, lm_dim) weights are
    # pre-split row-wise ONCE here (the concats are never materialized at run time).
    w_sum, b_sum = lin(ks[6], ks[7], 2 * lm_dim, lm_dim)
    p["vid_sum_proj_w_v"], p["vid_sum_proj_w_i"] = w_sum[:lm_dim], w_sum[lm_dim:]
    p["vid_sum_proj_b"] = b_sum
    w_env, b_env = lin(ks[8], ks[9], env_dim + lm_dim, lm_dim)
    p["vid_env_proj_w_v"], p["vid_env_proj_w_e"] = w_env[:lm_dim], w_env[lm_dim:]
    p["vid_env_proj_b"] = b_env
    return p


# ----------------------------- forward -----------------------------

def ground_vqa_forward(params, v_feat, v_mask, q_token, q_mask, env_feat, env_mask,
                       compute_dtype=jnp.bfloat16):
    B, Lv, _ = v_feat.shape
    D = params["lm_proj_w"].shape[1]
    T = Lv
    cdt = compute_dtype

    # ---------------- forward_encoder ----------------
    # lm_proj(v_feat) + v_emb  (v_emb is a per-feature add -> folded into the f32 bias)
    v_proj = linear_bias(
        v_feat.reshape(B * Lv, -1).astype(cdt),
        params["lm_proj_w"].astype(cdt),
        params["lm_proj_b"] + params["v_emb"],
    ).reshape(B, Lv, D)

    q_feat = jnp.take(params["embed_tokens"].astype(cdt), q_token, axis=0)  # embedding lookup
    encoder_out = jnp.concatenate([q_feat, v_proj], axis=1)
    lm_mask = jnp.concatenate([q_mask, v_mask], axis=1)
    # TODO(synk): self.lm.encoder is a pretrained HF T5 encoder (external checkpoint);
    # it is treated as identity on its input embeddings, so encoder_out[:, -Lv:] == v_proj.
    enc_v = v_proj

    # ---------------- after_forward (vid_sum_arch='vid_t_proj' + vid_env_arch='concat') ----------------
    # vid_t_proj acts along time; the zero-pad to 1200 contributes nothing and the
    # nearest interp back to T is a static gather of OUTPUT indices, so both fold into
    # a weight-side gather (done once on the small weight, never on activations):
    #   interp[b,t,d] = sum_{t'<T} W_t[t', idx(t)] * enc_v[b,t',d] + b_t[idx(t)]
    idx_t = (jnp.arange(T) * 600) // T                  # PyTorch 'nearest': floor(i*in/out)
    wg_t = jnp.take(params["vid_t_proj_w"][:T], idx_t, axis=1).T.astype(cdt)   # (T, T)
    bg = jnp.take(params["vid_t_proj_b"], idx_t).reshape(T, 1)                 # (T, 1) f32

    # nearest-interp gather of the (small) env features stays in XLA.
    T_env = env_feat.shape[1]
    idx_e = (jnp.arange(T) * T_env) // T
    env_i = jnp.take(env_feat.astype(cdt), idx_e, axis=1)                      # (B, T, E)

    enc_v = vid_sum_env_fused(
        enc_v, wg_t, bg,
        v_mask.astype(jnp.float32).reshape(B, T, 1), env_i,
        params["vid_sum_proj_w_v"].astype(cdt),
        params["vid_sum_proj_w_i"].astype(cdt),
        params["vid_sum_proj_b"],
        params["vid_env_proj_w_v"].astype(cdt),
        params["vid_env_proj_w_e"].astype(cdt),
        params["vid_env_proj_b"],
    )

    # TODO(synk): NLQHead (localization loss) and the seq2seq LM loss are external modules
    # with no definition provided; the ignore_decoder=True path would return (time_loss, 0, time_loss).
    return encoder_out, lm_mask, enc_v


# ----------------------------- driver -----------------------------

if __name__ == "__main__":
    key = jax.random.PRNGKey(0)
    B, Lv, Lq = 2, 8, 6
    input_dim, lm_dim, env_dim, vocab, T_env = 32, 64, 16, 100, 5

    kp, kv, kq, ke = jax.random.split(key, 4)
    params = init_params(kp, input_dim, lm_dim, env_dim, vocab)

    v_feat = jax.random.normal(kv, (B, Lv, input_dim), jnp.float32)
    v_mask = jnp.ones((B, Lv), jnp.float32)
    q_token = jax.random.randint(kq, (B, Lq), 0, vocab)
    q_mask = jnp.ones((B, Lq), jnp.float32)
    env_feat = jax.random.normal(ke, (B, T_env, env_dim), jnp.float32)
    env_mask = jnp.ones((B, T_env), jnp.float32)

    enc_out, mask, enc_out_v = jax.jit(ground_vqa_forward)(
        params, v_feat, v_mask, q_token, q_mask, env_feat, env_mask)
    jax.block_until_ready((enc_out, mask, enc_out_v))

    assert enc_out.shape == (B, Lq + Lv, lm_dim)
    assert mask.shape == (B, Lq + Lv)
    assert enc_out_v.shape == (B, Lv, lm_dim)
    assert bool(jnp.all(jnp.isfinite(enc_out_v.astype(jnp.float32))))
    print("KERNEL_OK")
</pallas_src>

<mosaic_0001>
module attributes {stable_mosaic.version = 11 : i64} {
  func.func @_linear_bias_kernel(%arg0: i32, %arg1: memref<16x32xbf16, #tpu.memory_space<vmem>>, %arg2: memref<32x64xbf16, #tpu.memory_space<vmem>>, %arg3: memref<1x64xf32, #tpu.memory_space<vmem>>, %arg4: memref<16x64xbf16, #tpu.memory_space<vmem>>) attributes {dimension_semantics = [#tpu.dimension_semantics<parallel>], iteration_bounds = array<i64: 1>, scalar_prefetch = 0 : i64, scratch_operands = 0 : i64, tpu.core_type = #tpu.core_type<tc>, window_params = [{transform_indices = @transform_0, window_bounds = array<i64: 16, 32>}, {pipeline_mode = #tpu.pipeline_mode<synchronous>, transform_indices = @transform_1, window_bounds = array<i64: 32, 64>}, {pipeline_mode = #tpu.pipeline_mode<synchronous>, transform_indices = @transform_2, window_bounds = array<i64: 1, 64>}, {transform_indices = @transform_3, window_bounds = array<i64: 16, 64>}]} {
    %c0 = arith.constant 0 : index
    %c0_0 = arith.constant 0 : index
    %0 = vector.load %arg1[%c0, %c0_0] : memref<16x32xbf16, #tpu.memory_space<vmem>>, vector<16x32xbf16>
    %c0_1 = arith.constant 0 : index
    %c0_2 = arith.constant 0 : index
    %1 = vector.load %arg2[%c0_1, %c0_2] : memref<32x64xbf16, #tpu.memory_space<vmem>>, vector<32x64xbf16>
    %cst = arith.constant dense<0.000000e+00> : vector<16x64xf32>
    %2 = tpu.matmul %0, %1, %cst {dimension_numbers = #tpu.dot_dimension_numbers<[1], [0], [0], [1], [0, 0, 1, 1], [], []>} : vector<16x32xbf16>, vector<32x64xbf16>, vector<16x64xf32> -> vector<16x64xf32>
    %c0_3 = arith.constant 0 : index
    %c0_4 = arith.constant 0 : index
    %3 = vector.load %arg3[%c0_3, %c0_4] : memref<1x64xf32, #tpu.memory_space<vmem>>, vector<1x64xf32>
    %4 = vector.broadcast %3 : vector<1x64xf32> to vector<16x64xf32>
    %5 = arith.addf %2, %4 : vector<16x64xf32>
    %6 = arith.truncf %5 : vector<16x64xf32> to vector<16x64xbf16>
    %c0_5 = arith.constant 0 : index
    %c0_6 = arith.constant 0 : index
    %7 = vector.load %arg4[%c0_5, %c0_6] : memref<16x64xbf16, #tpu.memory_space<vmem>>, vector<16x64xbf16>
    tpu.vector_store %arg4[%c0_5, %c0_6], %6 {strides = array<i32>} : memref<16x64xbf16, #tpu.memory_space<vmem>>, vector<16x64xbf16>,
    return
  }
  func.func @transform_0(%arg0: i32) -> (i32, i32) {
    %c0_i32 = arith.constant 0 : i32
    %c0_i32_0 = arith.constant 0 : i32
    return %arg0, %c0_i32 : i32, i32
  }
  func.func @transform_1(%arg0: i32) -> (i32, i32) {
    %c0_i32 = arith.constant 0 : i32
    %c0_i32_0 = arith.constant 0 : i32
    %c0_i32_1 = arith.constant 0 : i32
    return %c0_i32, %c0_i32_0 : i32, i32
  }
  func.func @transform_2(%arg0: i32) -> (i32, i32) {
    %c0_i32 = arith.constant 0 : i32
    %c0_i32_0 = arith.constant 0 : i32
    %c0_i32_1 = arith.constant 0 : i32
    return %c0_i32, %c0_i32_0 : i32, i32
  }
  func.func @transform_3(%arg0: i32) -> (i32, i32) {
    %c0_i32 = arith.constant 0 : i32
    %c0_i32_0 = arith.constant 0 : i32
    return %arg0, %c0_i32 : i32, i32
  }
}

module attributes {stable_mosaic.version = 11 : i64} {
  func.func @_vid_sum_env_kernel(%arg0: i32, %arg1: i32, %arg2: memref<1x8x64xbf16, #tpu.memory_space<vmem>>, %arg3: memref<8x8xbf16, #tpu.memory_space<vmem>>, %arg4: memref<8x1xf32, #tpu.memory_space<vmem>>, %arg5: memref<1x8x1xf32, #tpu.memory_space<vmem>>, %arg6: memref<1x8x16xbf16, #tpu.memory_space<vmem>>, %arg7: memref<64x64xbf16, #tpu.memory_space<vmem>>, %arg8: memref<64x64xbf16, #tpu.memory_space<vmem>>, %arg9: memref<1x64xf32, #tpu.memory_space<vmem>>, %arg10: memref<64x64xbf16, #tpu.memory_space<vmem>>, %arg11: memref<16x64xbf16, #tpu.memory_space<vmem>>, %arg12: memref<1x64xf32, #tpu.memory_space<vmem>>, %arg13: memref<1x8x64xbf16, #tpu.memory_space<vmem>>) attributes {dimension_semantics = [#tpu.dimension_semantics<parallel>, #tpu.dimension_semantics<parallel>], iteration_bounds = array<i64: 2, 1>, scalar_prefetch = 0 : i64, scratch_operands = 0 : i64, tpu.core_type = #tpu.core_type<tc>, window_params = [{transform_indices = @transform_0, window_bounds = array<i64: 1, 8, 64>}, {transform_indices = @transform_1, window_bounds = array<i64: 8, 8>}, {transform_indices = @transform_2, window_bounds = array<i64: 8, 1>}, {transform_indices = @transform_3, window_bounds = array<i64: 1, 8, 1>}, {transform_indices = @transform_4, window_bounds = array<i64: 1, 8, 16>}, {pipeline_mode = #tpu.pipeline_mode<synchronous>, transform_indices = @transform_5, window_bounds = array<i64: 64, 64>}, {pipeline_mode = #tpu.pipeline_mode<synchronous>, transform_indices = @transform_6, window_bounds = array<i64: 64, 64>}, {pipeline_mode = #tpu.pipeline_mode<synchronous>, transform_indices = @transform_7, window_bounds = array<i64: 1, 64>}, {pipeline_mode = #tpu.pipeline_mode<synchronous>, transform_indices = @transform_8, window_bounds = array<i64: 64, 64>}, {pipeline_mode = #tpu.pipeline_mode<synchronous>, transform_indices = @transform_9, window_bounds = array<i64: 16, 64>}, {pipeline_mode = #tpu.pipeline_mode<synchronous>, transform_indices = @transform_10, window_bounds = array<i64: 1, 64>}, {transform_indices = @transform_11, window_bounds = array<i64: 1, 8, 64>}]} {
    %c0 = arith.constant 0 : index
    %c0_0 = arith.constant 0 : index
    %c0_1 = arith.constant 0 : index
    %0 = vector.load %arg2[%c0, %c0_0, %c0_1] : memref<1x8x64xbf16, #tpu.memory_space<vmem>>, vector<1x8x64xbf16>
    %1 = vector.shape_cast %0 : vector<1x8x64xbf16> to vector<8x64xbf16>
    %c0_2 = arith.constant 0 : index
    %c0_3 = arith.constant 0 : index
    %2 = vector.load %arg3[%c0_2, %c0_3] : memref<8x8xbf16, #tpu.memory_space<vmem>>, vector<8x8xbf16>
    %cst = arith.constant dense<0.000000e+00> : vector<8x64xf32>
    %3 = tpu.matmul %2, %1, %cst {dimension_numbers = #tpu.dot_dimension_numbers<[1], [0], [0], [1], [0, 0, 1, 1], [], []>} : vector<8x8xbf16>, vector<8x64xbf16>, vector<8x64xf32> -> vector<8x64xf32>
    %c0_4 = arith.constant 0 : index
    %c0_5 = arith.constant 0 : index
    %4 = vector.load %arg4[%c0_4, %c0_5] : memref<8x1xf32, #tpu.memory_space<vmem>>, vector<8x1xf32>
    %5 = vector.broadcast %4 : vector<8x1xf32> to vector<8x64xf32>
    %6 = arith.addf %3, %5 : vector<8x64xf32>
    %c0_6 = arith.constant 0 : index
    %c0_7 = arith.constant 0 : index
    %c0_8 = arith.constant 0 : index
    %7 = vector.load %arg5[%c0_6, %c0_7, %c0_8] : memref<1x8x1xf32, #tpu.memory_space<vmem>>, vector<1x8x1xf32>
    %8 = vector.shape_cast %7 : vector<1x8x1xf32> to vector<8x1xf32>
    %9 = vector.broadcast %8 : vector<8x1xf32> to vector<8x64xf32>
    %10 = arith.mulf %6, %9 : vector<8x64xf32>
    %c0_9 = arith.constant 0 : index
    %c0_10 = arith.constant 0 : index
    %11 = vector.load %arg7[%c0_9, %c0_10] : memref<64x64xbf16, #tpu.memory_space<vmem>>, vector<64x64xbf16>
    %cst_11 = arith.constant dense<0.000000e+00> : vector<8x64xf32>
    %12 = tpu.matmul %1, %11, %cst_11 {dimension_numbers = #tpu.dot_dimension_numbers<[1], [0], [0], [1], [0, 0, 1, 1], [], []>} : vector<8x64xbf16>, vector<64x64xbf16>, vector<8x64xf32> -> vector<8x64xf32>
    %13 = arith.truncf %10 : vector<8x64xf32> to vector<8x64xbf16>
    %c0_12 = arith.constant 0 : index
    %c0_13 = arith.constant 0 : index
    %14 = vector.load %arg8[%c0_12, %c0_13] : memref<64x64xbf16, #tpu.memory_space<vmem>>, vector<64x64xbf16>
    %cst_14 = arith.constant dense<0.000000e+00> : vector<8x64xf32>
    %15 = tpu.matmul %13, %14, %cst_14 {dimension_numbers = #tpu.dot_dimension_numbers<[1], [0], [0], [1], [0, 0, 1, 1], [], []>} : vector<8x64xbf16>, vector<64x64xbf16>, vector<8x64xf32> -> vector<8x64xf32>
    %16 = arith.addf %12, %15 : vector<8x64xf32>
    %c0_15 = arith.constant 0 : index
    %c0_16 = arith.constant 0 : index
    %17 = vector.load %arg9[%c0_15, %c0_16] : memref<1x64xf32, #tpu.memory_space<vmem>>, vector<1x64xf32>
    %18 = vector.broadcast %17 : vector<1x64xf32> to vector<8x64xf32>
    %19 = arith.addf %16, %18 : vector<8x64xf32>
    %20 = arith.extf %1 : vector<8x64xbf16> to vector<8x64xf32>
    %cst_17 = arith.constant 5.000000e-01 : f32
    %21 = vector.broadcast %cst_17 : f32 to vector<8x64xf32>
    %22 = arith.mulf %21, %19 : vector<8x64xf32>
    %23 = arith.mulf %19, %19 : vector<8x64xf32>
    %24 = arith.mulf %23, %19 : vector<8x64xf32>
    %cst_18 = arith.constant 4.471500e-02 : f32
    %25 = vector.broadcast %cst_18 : f32 to vector<8x64xf32>
    %26 = arith.mulf %25, %24 : vector<8x64xf32>
    %27 = arith.addf %19, %26 : vector<8x64xf32>
    %cst_19 = arith.constant 0.797884583 : f32
    %28 = vector.broadcast %cst_19 : f32 to vector<8x64xf32>
    %29 = arith.mulf %28, %27 : vector<8x64xf32>
    %30 = math.tanh %29 : vector<8x64xf32>
    %cst_20 = arith.constant 1.000000e+00 : f32
    %31 = vector.broadcast %cst_20 : f32 to vector<8x64xf32>
    %32 = arith.addf %31, %30 : vector<8x64xf32>
    %33 = arith.mulf %22, %32 : vector<8x64xf32>
    %34 = arith.addf %20, %33 : vector<8x64xf32>
    %35 = arith.truncf %34 : vector<8x64xf32> to vector<8x64xbf16>
    %c0_21 = arith.constant 0 : index
    %c0_22 = arith.constant 0 : index
    %36 = vector.load %arg10[%c0_21, %c0_22] : memref<64x64xbf16, #tpu.memory_space<vmem>>, vector<64x64xbf16>
    %cst_23 = arith.constant dense<0.000000e+00> : vector<8x64xf32>
    %37 = tpu.matmul %35, %36, %cst_23 {dimension_numbers = #tpu.dot_dimension_numbers<[1], [0], [0], [1], [0, 0, 1, 1], [], []>} : vector<8x64xbf16>, vector<64x64xbf16>, vector<8x64xf32> -> vector<8x64xf32>
    %c0_24 = arith.constant 0 : index
    %c0_25 = arith.constant 0 : index
    %c0_26 = arith.constant 0 : index
    %38 = vector.load %arg6[%c0_24, %c0_25, %c0_26] : memref<1x8x16xbf16, #tpu.memory_space<vmem>>, vector<1x8x16xbf16>
    %39 = vector.shape_cast %38 : vector<1x8x16xbf16> to vector<8x16xbf16>
    %c0_27 = arith.constant 0 : index
    %c0_28 = arith.constant 0 : index
    %40 = vector.load %arg11[%c0_27, %c0_28] : memref<16x64xbf16, #tpu.memory_space<vmem>>, vector<16x64xbf16>
    %cst_29 = arith.constant dense<0.000000e+00> : vector<8x64xf32>
    %41 = tpu.matmul %39, %40, %cst_29 {dimension_numbers = #tpu.dot_dimension_numbers<[1], [0], [0], [1], [0, 0, 1, 1], [], []>} : vector<8x16xbf16>, vector<16x64xbf16>, vector<8x64xf32> -> vector<8x64xf32>
    %42 = arith.addf %37, %41 : vector<8x64xf32>
    %c0_30 = arith.constant 0 : index
    %c0_31 = arith.constant 0 : index
    %43 = vector.load %arg12[%c0_30, %c0_31] : memref<1x64xf32, #tpu.memory_space<vmem>>, vector<1x64xf32>
    %44 = vector.broadcast %43 : vector<1x64xf32> to vector<8x64xf32>
    %45 = arith.addf %42, %44 : vector<8x64xf32>
    %cst_32 = arith.constant 5.000000e-01 : f32
    %46 = vector.broadcast %cst_32 : f32 to vector<8x64xf32>
    %47 = arith.mulf %46, %45 : vector<8x64xf32>
    %48 = arith.mulf %45, %45 : vector<8x64xf32>
    %49 = arith.mulf %48, %45 : vector<8x64xf32>
    %cst_33 = arith.constant 4.471500e-02 : f32
    %50 = vector.broadcast %cst_33 : f32 to vector<8x64xf32>
    %51 = arith.mulf %50, %49 : vector<8x64xf32>
    %52 = arith.addf %45, %51 : vector<8x64xf32>
    %cst_34 = arith.constant 0.797884583 : f32
    %53 = vector.broadcast %cst_34 : f32 to vector<8x64xf32>
    %54 = arith.mulf %53, %52 : vector<8x64xf32>
    %55 = math.tanh %54 : vector<8x64xf32>
    %cst_35 = arith.constant 1.000000e+00 : f32
    %56 = vector.broadcast %cst_35 : f32 to vector<8x64xf32>
    %57 = arith.addf %56, %55 : vector<8x64xf32>
    %58 = arith.mulf %47, %57 : vector<8x64xf32>
    %59 = arith.addf %34, %58 : vector<8x64xf32>
    %60 = arith.truncf %59 : vector<8x64xf32> to vector<8x64xbf16>
    %c0_36 = arith.constant 0 : index
    %c0_37 = arith.constant 0 : index
    %c0_38 = arith.constant 0 : index
    %61 = vector.load %arg13[%c0_36, %c0_37, %c0_38] : memref<1x8x64xbf16, #tpu.memory_space<vmem>>, vector<1x8x64xbf16>
    %62 = vector.shape_cast %61 : vector<1x8x64xbf16> to vector<8x64xbf16>
    %63 = vector.shape_cast %60 : vector<8x64xbf16> to vector<1x8x64xbf16>
    tpu.vector_store %arg13[%c0_36, %c0_37, %c0_38], %63 {strides = array<i32>} : memref<1x8x64xbf16, #tpu.memory_space<vmem>>, vector<1x8x64xbf16>,
    return
  }
  func.func @transform_0(%arg0: i32, %arg1: i32) -> (i32, i32, i32) {
    %c0_i32 = arith.constant 0 : i32
    %c0_i32_0 = arith.constant 0 : i32
    %c0_i32_1 = arith.constant 0 : i32
    return %arg0, %c0_i32, %c0_i32_0 : i32, i32, i32
  }
  func.func @transform_1(%arg0: i32, %arg1: i32) -> (i32, i32) {
    %c0_i32 = arith.constant 0 : i32
    %c0_i32_0 = arith.constant 0 : i32
    return %arg1, %c0_i32 : i32, i32
  }
  func.func @transform_2(%arg0: i32, %arg1: i32) -> (i32, i32) {
    %c0_i32 = arith.constant 0 : i32
    %c0_i32_0 = arith.constant 0 : i32
    return %arg1, %c0_i32 : i32, i32
  }
  func.func @transform_3(%arg0: i32, %arg1: i32) -> (i32, i32, i32) {
    %c0_i32 = arith.constant 0 : i32
    %c0_i32_0 = arith.constant 0 : i32
    return %arg0, %arg1, %c0_i32 : i32, i32, i32
  }
  func.func @transform_4(%arg0: i32, %arg1: i32) -> (i32, i32, i32) {
    %c0_i32 = arith.constant 0 : i32
    %c0_i32_0 = arith.constant 0 : i32
    return %arg0, %arg1, %c0_i32 : i32, i32, i32
  }
  func.func @transform_5(%arg0: i32, %arg1: i32) -> (i32, i32) {
    %c0_i32 = arith.constant 0 : i32
    %c0_i32_0 = arith.constant 0 : i32
    %c0_i32_1 = arith.constant 0 : i32
    return %c0_i32, %c0_i32_0 : i32, i32
  }
  func.func @transform_6(%arg0: i32, %arg1: i32) -> (i32, i32) {
    %c0_i32 = arith.constant 0 : i32
    %c0_i32_0 = arith.constant 0 : i32
    %c0_i32_1 = arith.constant 0 : i32
    return %c0_i32, %c0_i32_0 : i32, i32
  }
  func.func @transform_7(%arg0: i32, %arg1: i32) -> (i32, i32) {
    %c0_i32 = arith.constant 0 : i32
    %c0_i32_0 = arith.constant 0 : i32
    %c0_i32_1 = arith.constant 0 : i32
    return %c0_i32, %c0_i32_0 : i32, i32
  }
  func.func @transform_8(%arg0: i32, %arg1: i32) -> (i32, i32) {
    %c0_i32 = arith.constant 0 : i32
    %c0_i32_0 = arith.constant 0 : i32
    %c0_i32_1 = arith.constant 0 : i32
    return %c0_i32, %c0_i32_0 : i32, i32
  }
  func.func @transform_9(%arg0: i32, %arg1: i32) -> (i32, i32) {
    %c0_i32 = arith.constant 0 : i32
    %c0_i32_0 = arith.constant 0 : i32
    %c0_i32_1 = arith.constant 0 : i32
    return %c0_i32, %c0_i32_0 : i32, i32
  }
  func.func @transform_10(%arg0: i32, %arg1: i32) -> (i32, i32) {
    %c0_i32 = arith.constant 0 : i32
    %c0_i32_0 = arith.constant 0 : i32
    %c0_i32_1 = arith.constant 0 : i32
    return %c0_i32, %c0_i32_0 : i32, i32
  }
  func.func @transform_11(%arg0: i32, %arg1: i32) -> (i32, i32, i32) {
    %c0_i32 = arith.constant 0 : i32
    %c0_i32_0 = arith.constant 0 : i32
    return %arg0, %arg1, %c0_i32 : i32, i32, i32
  }
}

</mosaic_0001>

<llo_original>
// kernel: ground_vqa_forward.2
$region0: #{ground_vqa_forward.2}
  #allocation0 [shape = 'u32[]', space=smem, size = 0x4, offset = 0x4, fixed_abs, tag = 'smem constant byte address 0x4 - core index']
  #allocation1 [shape = 'u32[144,128]{1,0:T(1,128)}', space=vmem, size = 0x12000, scoped, tag = 'internal scratch']
  %s0 = inlined_call_operand.hbm [shape: bf16[16,32], index: 0, kind: input, shape index: {}]
  %s1 = inlined_call_operand.hbm [shape: bf16[32,64], index: 1, kind: input, shape index: {}]
  %s2 = inlined_call_operand.hbm [shape: f32[1,64], index: 2, kind: input, shape index: {}]
  %s3 = inlined_call_operand.hbm [shape: bf16[16,64], index: 3, kind: output, shape index: {}]
  %s4 = sld [smem:[#allocation0]]
  $region34: #{ground_vqa_forward.2} parent=0
    _
  %s6 = ssub.s32 1, %s4
  %s7 = scalar_select 0, %s6, %s4
  $region1: #{ground_vqa_forward.2} parent=0
    #allocation2 [shape = 'u8[4096]{0}', space=vmem, size = 0x1000, scoped, tag = 'input window, operand 0, single buffered']
    #allocation3 [shape = 's32[1]{0}', space=sflag, size = 0x4, scoped, tag = 'scoped memory for ground_vqa_forward.2']
    #allocation4 [shape = 's32[1]{0}', space=sflag, size = 0x4, scoped, tag = 'scoped memory for ground_vqa_forward.2']
    #allocation5 [shape = 'u8[8192]{0}', space=vmem, size = 0x2000, scoped, tag = 'input window, operand 1, single buffered']
    #allocation6 [shape = 's32[1]{0}', space=sflag, size = 0x4, scoped, tag = 'scoped memory for ground_vqa_forward.2']
    #allocation7 [shape = 'u8[512]{0}', space=vmem, size = 0x400, scoped, tag = 'input window, operand 2, single buffered']
    #allocation8 [shape = 'u8[4096]{0}', space=vmem, size = 0x1000, scoped, tag = 'output window, operand 0, single buffered']
    %8 = vsyncpa [#allocation3], 0
    %9 = vsyncpa [#allocation6], 0
    %10 = vsyncpa [#allocation4], 0
    // Predicated region
    $region2: #{ground_vqa_forward.2} parent=1 // pred_check
      _
    $region3: #{ground_vqa_forward.2} parent=1 // pred_check_branch
      %12 = sbr.rel (0) target = $region5
    $region4: #{ground_vqa_forward.2} parent=1 // pred_region
      %s14 = ssub.s32 128, 128
      %15 = vsyncadd [#allocation3], %s14
      %s16 = sshll.u32 [#allocation2], 4
      %s17 = int_to_ptr.vmem [resolvable:$true] %s16
      %22 = dma.hbm_to_vmem [thread:$0]  %s0, 128, %s17, [#allocation3], 64, 64, 4
    $region5: #{ground_vqa_forward.2} parent=1 // pred_fallthru
      _
    // Predicated region
    $region6: #{ground_vqa_forward.2} parent=1 // pred_check
      _
    $region7: #{ground_vqa_forward.2} parent=1 // pred_check_branch
      %24 = sbr.rel (0) target = $region9
    $region8: #{ground_vqa_forward.2} parent=1 // pred_region
      %s26 = ssub.s32 256, 256
      %27 = vsyncadd [#allocation6], %s26
      %s28 = sshll.u32 [#allocation5], 4
      %s29 = int_to_ptr.vmem [resolvable:$true] %s28
      %34 = dma.hbm_to_vmem [thread:$0]  %s1, 256, %s29, [#allocation6], 64, 64, 4
    $region9: #{ground_vqa_forward.2} parent=1 // pred_fallthru
      _
    // Predicated region
    $region10: #{ground_vqa_forward.2} parent=1 // pred_check
      _
    $region11: #{ground_vqa_forward.2} parent=1 // pred_check_branch
      %36 = sbr.rel (0) target = $region13
    $region12: #{ground_vqa_forward.2} parent=1 // pred_region
      %s38 = ssub.s32 16, 16
      %39 = vsyncadd [#allocation6], %s38
      %s41 = sshll.u32 [#allocation7], 4
      %s42 = int_to_ptr.vmem [resolvable:$true] %s41
      %44 = dma.hbm_to_vmem [thread:$0]  %s2, 16, %s42, [#allocation6]
    $region13: #{ground_vqa_forward.2} parent=1 // pred_fallthru
      _
    // Predicated region
    $region14: #{ground_vqa_forward.2} parent=1 // pred_check
      _
    $region15: #{ground_vqa_forward.2} parent=1 // pred_check_branch
      %46 = sbr.rel (0) target = $region17
    $region16: #{ground_vqa_forward.2} parent=1 // pred_region
      %47 = dma.done [#allocation3], 128
    $region17: #{ground_vqa_forward.2} parent=1 // pred_fallthru
      _
    // Predicated region
    $region18: #{ground_vqa_forward.2} parent=1 // pred_check
      _
    $region19: #{ground_vqa_forward.2} parent=1 // pred_check_branch
      %49 = sbr.rel (0) target = $region21
    $region20: #{ground_vqa_forward.2} parent=1 // pred_region
      %50 = dma.done [#allocation6], 256
    $region21: #{ground_vqa_forward.2} parent=1 // pred_fallthru
      _
    // Predicated region
    $region22: #{ground_vqa_forward.2} parent=1 // pred_check
      _
    $region23: #{ground_vqa_forward.2} parent=1 // pred_check_branch
      %52 = sbr.rel (0) target = $region25
    $region24: #{ground_vqa_forward.2} parent=1 // pred_region
      %53 = dma.done [#allocation6], 16
    $region25: #{ground_vqa_forward.2} parent=1 // pred_fallthru
      _
    %v55 = vld [vmem:[#allocation2] sm:$0xf]
    %v56 = vld [vmem:[#allocation2 + $0x4] sm:$0xf]
    %v57 = vld [vmem:[#allocation5] sm:$0xf]
    %v58 = vld [vmem:[#allocation5 + $0x4] sm:$0xf]
    %v59 = vld [vmem:[#allocation5 + $0x8] sm:$0xf]
    %v60 = vld [vmem:[#allocation5 + $0xc] sm:$0xf]
    %v61 = vld [vmem:[#allocation7] sm:$0x1]
    %v63 = vlaneseq
    %v64 = vshrl.u32 %v63, 7
    %v65 = vsub.s32 0, %v64
    %v66 = vrot.slane %v61, %v65
    %v70 = vunpack.c.l.b16 %v55
    %v71 = vunpack.c.l.b16 %v56
    %v72 = vpack.c.b16 %v71, %v70
    %v77 = vunpack.c.l.b16 %v57
    %v78 = vunpack.c.l.b16 %v58
    %v79 = vunpack.c.l.b16 %v59
    %v80 = vunpack.c.l.b16 %v60
    %v81 = vpack.c.b16 %v78, %v77
    %v82 = vpack.c.b16 %v80, %v79
    %vm85 = vcmask 261120
    %v87 = vsel %vm85, %v72, 0
    %89 = vmatprep.subr.bf16.mxu0 0
    %90 = vmatpush1.bf16.msra.mxu0 %v81
    %91 = vmatprep.subr.bf16.mxu0 0
    %92 = vmatpush1.bf16.msra.mxu0 %v82
    %93 = vmatprep.subr.bf16.mxu0 0
    %94 = vmatpush1.bf16.msra.mxu0 0
    %95 = vmatprep.subr.bf16.mxu0 0
    %96 = vmatpush1.bf16.msra.mxu0 0
    %97 = vmatprep.subr.bf16.mxu0 0
    %98 = vmatpush1.bf16.msra.mxu0 0
    %99 = vmatprep.subr.bf16.mxu0 0
    %100 = vmatpush1.bf16.msra.mxu0 0
    %101 = vmatprep.subr.bf16.mxu0 0
    %102 = vmatpush1.bf16.msra.mxu0 0
    %103 = vmatprep.subr.bf16.mxu0 0
    %104 = vmatpush1.bf16.msra.mxu0 0
    %105 = vmatprep.subr.bf16.mxu0 0
    %106 = vmatpush1.bf16.msra.mxu0 0
    %107 = vmatprep.subr.bf16.mxu0 0
    %108 = vmatpush1.bf16.msra.mxu0 0
    %109 = vmatprep.subr.bf16.mxu0 0
    %110 = vmatpush1.bf16.msra.mxu0 0
    %111 = vmatprep.subr.bf16.mxu0 0
    %112 = vmatpush1.bf16.msra.mxu0 0
    %113 = vmatprep.subr.bf16.mxu0 0
    %114 = vmatpush1.bf16.msra.mxu0 0
    %115 = vmatprep.subr.bf16.mxu0 0
    %116 = vmatpush1.bf16.msra.mxu0 0
    %117 = vmatprep.subr.bf16.mxu0 0
    %118 = vmatpush1.bf16.msra.mxu0 0
    %119 = vmatprep.subr.bf16.mxu0 0
    %120 = vmatpush1.bf16.msra.mxu0 0
    %121 = vmatprep.mubr.bf16.mxu0 0
    %122 = vmatmul.mubr.bf16.gmra.mrb[0].mxu0 %v87
    %v123 = vpop.f32.mrb[0].mxu0
    %v124 = vadd.f32 %v66, %v123
    %v125 = vpop.f32.mrb[0].mxu0
    %v126 = vpop.f32.mrb[0].mxu0
    %v127 = vadd.f32 %v66, %v126
    %v128 = vpop.f32.mrb[0].mxu0
    %129 = vdwg.mxu0
    %v130 = vpack.c.bf16 %v127, %v124
    %v132 = vunpack.c.l.b16 %v130
    %v133 = vunpack.c.h.b16 %v130
    %v134 = vpack.c.b16 %v132, %v132
    %v135 = vpack.c.b16 %v133, %v133
    %vm138 = vcmask 519168
    %139 = vst.msk [vmem:[#allocation8] sm:$0xf] %vm138, %v134
    %140 = vst.msk [vmem:[#allocation8 + $0x4] sm:$0xf] %vm138, %v135
    // Predicated region
    $region26: #{ground_vqa_forward.2} parent=1 // pred_check
      _
    $region27: #{ground_vqa_forward.2} parent=1 // pred_check_branch
      %142 = sbr.rel (0) target = $region29
    $region28: #{ground_vqa_forward.2} parent=1 // pred_region
      %s144 = ssub.s32 128, 128
      %145 = vsyncadd [#allocation4], %s144
      %s146 = sshll.u32 [#allocation8], 4
      %s147 = int_to_ptr.vmem [resolvable:$true] %s146
      %152 = dma.vmem_to_hbm [thread:$0]  %s147, 128, %s3, [#allocation4], 64, 64, 4
    $region29: #{ground_vqa_forward.2} parent=1 // pred_fallthru
      _
    // Predicated region
    $region30: #{ground_vqa_forward.2} parent=1 // pred_check
      _
    $region31: #{ground_vqa_forward.2} parent=1 // pred_check_branch
      %154 = sbr.rel (0) target = $region33
    $region32: #{ground_vqa_forward.2} parent=1 // pred_region
      %155 = dma.done [#allocation4], 128
    $region33: #{ground_vqa_forward.2} parent=1 // pred_fallthru
      _
    %156 = vsyncpa [#allocation3], 1
    %157 = vsyncpa [#allocation6], 1
    %158 = vsyncpa [#allocation4], 1

// kernel: ground_vqa_forward.3
$region0: #{ground_vqa_forward.3}
  #allocation0 [shape = 'u32[]', space=smem, size = 0x4, offset = 0x4, fixed_abs, tag = 'smem constant byte address 0x4 - core index']
  #allocation1 [shape = 'u32[144,128]{1,0:T(1,128)}', space=vmem, size = 0x12000, scoped, tag = 'internal scratch']
  %s0 = inlined_call_operand.hbm [shape: bf16[2,8,64], index: 0, kind: input, shape index: {}]
  %s1 = inlined_call_operand.hbm [shape: bf16[8,8], index: 1, kind: input, shape index: {}]
  %s2 = inlined_call_operand.hbm [shape: f32[8,1], index: 2, kind: input, shape index: {}]
  %s3 = inlined_call_operand.hbm [shape: f32[2,8,1], index: 3, kind: input, shape index: {}]
  %s4 = inlined_call_operand.hbm [shape: bf16[2,8,16], index: 4, kind: input, shape index: {}]
  %s5 = inlined_call_operand.hbm [shape: bf16[64,64], index: 5, kind: input, shape index: {}]
  %s6 = inlined_call_operand.hbm [shape: bf16[64,64], index: 6, kind: input, shape index: {}]
  %s7 = inlined_call_operand.hbm [shape: f32[1,64], index: 7, kind: input, shape index: {}]
  %s8 = inlined_call_operand.hbm [shape: bf16[64,64], index: 8, kind: input, shape index: {}]
  %s9 = inlined_call_operand.hbm [shape: bf16[16,64], index: 9, kind: input, shape index: {}]
  %s10 = inlined_call_operand.hbm [shape: f32[1,64], index: 10, kind: input, shape index: {}]
  %s11 = inlined_call_operand.hbm [shape: bf16[2,8,64], index: 11, kind: output, shape index: {}]
  %s12 = sld [smem:[#allocation0]]
  $region121: #{ground_vqa_forward.3} parent=0
    _
  %s14 = ssub.s32 1, %s12
  %s15 = scalar_select 0, %s14, %s12
  $region1: #{ground_vqa_forward.3} parent=0
    #allocation2 [shape = 'u8[4096]{0}', space=vmem, size = 0x1000, scoped, tag = 'input window, operand 0']
    #allocation3 [shape = 's32[2]{0}', space=sflag, size = 0x8, scoped, tag = 'scoped memory for ground_vqa_forward.3']
    #allocation4 [shape = 's32[2]{0}', space=sflag, size = 0x8, scoped, tag = 'scoped memory for ground_vqa_forward.3']
    #allocation5 [shape = 'u8[2048]{0}', space=vmem, size = 0x800, scoped, tag = 'input window, operand 1, single buffered']
    #allocation6 [shape = 's32[1]{0}', space=sflag, size = 0x4, scoped, tag = 'scoped memory for ground_vqa_forward.3']
    #allocation7 [shape = 'u8[4096]{0}', space=vmem, size = 0x1000, scoped, tag = 'input window, operand 2, single buffered']
    #allocation8 [shape = 'u8[8192]{0}', space=vmem, size = 0x2000, scoped, tag = 'input window, operand 3']
    #allocation9 [shape = 's32[2]{0}', space=sflag, size = 0x8, scoped, tag = 'scoped memory for ground_vqa_forward.3']
    #allocation10 [shape = 'u8[4096]{0}', space=vmem, size = 0x1000, scoped, tag = 'input window, operand 4']
    #allocation11 [shape = 'u8[16384]{0}', space=vmem, size = 0x4000, scoped, tag = 'input window, operand 5, single buffered']
    #allocation12 [shape = 's32[1]{0}', space=sflag, size = 0x4, scoped, tag = 'scoped memory for ground_vqa_forward.3']
    #allocation13 [shape = 'u8[16384]{0}', space=vmem, size = 0x4000, scoped, tag = 'input window, operand 6, single buffered']
    #allocation14 [shape = 'u8[512]{0}', space=vmem, size = 0x400, scoped, tag = 'input window, operand 7, single buffered']
    #allocation15 [shape = 's32[1]{0}', space=sflag, size = 0x4, scoped, tag = 'scoped memory for ground_vqa_forward.3']
    #allocation16 [shape = 'u8[16384]{0}', space=vmem, size = 0x4000, scoped, tag = 'input window, operand 8, single buffered']
    #allocation17 [shape = 'u8[4096]{0}', space=vmem, size = 0x1000, scoped, tag = 'input window, operand 9, single buffered']
    #allocation18 [shape = 's32[1]{0}', space=sflag, size = 0x4, scoped, tag = 'scoped memory for ground_vqa_forward.3']
    #allocation19 [shape = 'u8[512]{0}', space=vmem, size = 0x400, scoped, tag = 'input window, operand 10, single buffered']
    #allocation20 [shape = 'u8[4096]{0}', space=vmem, size = 0x1000, scoped, tag = 'output window, operand 0']
    %16 = vsyncpa [#allocation3], 0
    %s17 = scalar_lea.sflag [#allocation3], 1
    %18 = vsyncpa %s17, 0
    %19 = vsyncpa [#allocation6], 0
    %20 = vsyncpa [#allocation9], 0
    %s21 = scalar_lea.sflag [#allocation9], 1
    %22 = vsyncpa %s21, 0
    %23 = vsyncpa [#allocation12], 0
    %24 = vsyncpa [#allocation15], 0
    %25 = vsyncpa [#allocation18], 0
    %26 = vsyncpa [#allocation4], 0
    %s27 = scalar_lea.sflag [#allocation4], 1
    %28 = vsyncpa %s27, 0
    loop: start=0, step=1, limit=4
    $region2: #{ground_vqa_forward.3} parent=1 // loop_pre_header
      _
    $region3: #{ground_vqa_forward.3} parent=1 // loop_header
      %s30 = sphi 0, %s34
      %p31 = scmp.ge.s32.totalorder %s30, 4
      %s37 = sphi 0, %s49
      %s38 = sphi 0, %s45
      %s39 = sphi 0, %s37
      %s40 = sphi 0, %s38
      %s41 = sphi 0, %s39
      %s42 = sphi 0, %s40
      %s52 = sphi 0, %s54
      %s55 = sphi 0, %s52
      %s56 = sphi 0, %s55
      %s72 = sphi 0, %s56
      %s78 = sphi 0, %s80
      %s81 = sphi 0, %s78
      %s82 = sphi 0, %s81
      %s98 = sphi 0, %s82
      %s104 = sphi 0, %s106
      %s107 = sphi 0, %s104
      %s108 = sphi 0, %s107
      %s124 = sphi 0, %s108
      %s132 = sphi 0, %s134
      %s135 = sphi 0, %s132
      %s136 = sphi 0, %s135
      %s152 = sphi 0, %s136
      %s160 = sphi 0, %s162
      %s163 = sphi 0, %s160
      %s164 = sphi 0, %s163
      %s180 = sphi 0, %s164
      %s184 = sphi 0, %s184
      %s186 = sphi 0, %s184
      %s187 = sphi 0, %s186
      %s201 = sphi 0, %s187
      %s205 = sphi 0, %s205
      %s207 = sphi 0, %s205
      %s208 = sphi 0, %s207
      %s222 = sphi 0, %s208
      %s226 = sphi 0, %s226
      %s228 = sphi 0, %s226
      %s229 = sphi 0, %s228
      %s243 = sphi 0, %s229
      %s247 = sphi 0, %s247
      %s249 = sphi 0, %s247
      %s250 = sphi 0, %s249
      %s264 = sphi 0, %s250
      %s268 = sphi 0, %s268
      %s270 = sphi 0, %s268
      %s271 = sphi 0, %s270
      %s285 = sphi 0, %s271
      %s289 = sphi 0, %s289
      %s291 = sphi 0, %s289
      %s292 = sphi 0, %s291
      %s306 = sphi 0, %s292
      %s314 = sphi 0, %s316
      %s317 = sphi 0, %s314
      %s318 = sphi 0, %s317
      %s334 = sphi 0, %s318
    $region4: #{ground_vqa_forward.3} parent=1 // loop_header_branch
      %33 = sbr.rel (%p31) target = $region8
    $region5: #{ground_vqa_forward.3} parent=1 // loop_body
      %s35 = ssub.s32 %s30, 1
      %s36 = ssub.s32 %s30, 2
      %s43 = sadd.s32 1, %s38
      %p44 = scmp.ge.s32.totalorder %s43, 1
      %s45 = scalar_select %p44, 0, %s43
      %s46 = sadd.s32 1, %s37
      %s47 = scalar_select %p44, %s46, %s37
      %p48 = scmp.ge.s32.totalorder %s47, 2
      %s49 = scalar_select %p48, 0, %s47
      %s50 = ssub.s32 %s37, %s49
      %p51 = scmp.eq.s32.totalorder %s50, 0
      %s53 = sadd.s32 %s52, 1
      %s54 = scalar_select %p51, %s52, %s53
      %p57 = pneg %p51
      %p58 = scmp.eq.s32.totalorder %s30, 1
      %p59 = por %p57, %p58
      %p60 = scmp.ne.s32.totalorder %s52, %s55
      %p61 = scmp.eq.s32.totalorder %s30, 0
      %p62 = por %p60, %p61
      %p63 = scmp.ne.s32.totalorder %s52, %s55
      %p64 = scmp.eq.s32.totalorder %s35, 1
      %p65 = por %p63, %p64
      %p66 = scmp.ne.s32.totalorder %s55, %s56
      %p67 = scmp.eq.s32.totalorder %s35, 0
      %p68 = por %p66, %p67
      %p69 = scmp.ne.s32.totalorder %s55, %s56
      %p70 = scmp.eq.s32.totalorder %s36, 1
      %p71 = por %p69, %p70
      %p73 = scmp.ne.s32.totalorder %s56, %s72
      %p74 = scmp.eq.s32.totalorder %s36, 0
      %p75 = por %p73, %p74
      %s76 = ssub.s32 %s38, %s45
      %p77 = scmp.eq.s32.totalorder %s76, 0
      %s79 = sadd.s32 %s78, 1
      %s80 = scalar_select %p77, %s78, %s79
      %p83 = pneg %p77
      %p84 = scmp.eq.s32.totalorder %s30, 1
      %p85 = por %p83, %p84
      %p86 = scmp.ne.s32.totalorder %s78, %s81
      %p87 = scmp.eq.s32.totalorder %s30, 0
      %p88 = por %p86, %p87
      %p89 = scmp.ne.s32.totalorder %s78, %s81
      %p90 = scmp.eq.s32.totalorder %s35, 1
      %p91 = por %p89, %p90
      %p92 = scmp.ne.s32.totalorder %s81, %s82
      %p93 = scmp.eq.s32.totalorder %s35, 0
      %p94 = por %p92, %p93
      %p95 = scmp.ne.s32.totalorder %s81, %s82
      %p96 = scmp.eq.s32.totalorder %s36, 1
      %p97 = por %p95, %p96
      %p99 = scmp.ne.s32.totalorder %s82, %s98
      %p100 = scmp.eq.s32.totalorder %s36, 0
      %p101 = por %p99, %p100
      %s102 = ssub.s32 %s38, %s45
      %p103 = scmp.eq.s32.totalorder %s102, 0
      %s105 = sadd.s32 %s104, 1
      %s106 = scalar_select %p103, %s104, %s105
      %p109 = pneg %p103
      %p110 = scmp.eq.s32.totalorder %s30, 1
      %p111 = por %p109, %p110
      %p112 = scmp.ne.s32.totalorder %s104, %s107
      %p113 = scmp.eq.s32.totalorder %s30, 0
      %p114 = por %p112, %p113
      %p115 = scmp.ne.s32.totalorder %s104, %s107
      %p116 = scmp.eq.s32.totalorder %s35, 1
      %p117 = por %p115, %p116
      %p118 = scmp.ne.s32.totalorder %s107, %s108
      %p119 = scmp.eq.s32.totalorder %s35, 0
      %p120 = por %p118, %p119
      %p121 = scmp.ne.s32.totalorder %s107, %s108
      %p122 = scmp.eq.s32.totalorder %s36, 1
      %p123 = por %p121, %p122
      %p125 = scmp.ne.s32.totalorder %s108, %s124
      %p126 = scmp.eq.s32.totalorder %s36, 0
      %p127 = por %p125, %p126
      %s128 = ssub.s32 %s37, %s49
      %s129 = ssub.s32 %s38, %s45
      %s130 = sor.u32 %s128, %s129
      %p131 = scmp.eq.s32.totalorder %s130, 0
      %s133 = sadd.s32 %s132, 1
      %s134 = scalar_select %p131, %s132, %s133
      %p137 = pneg %p131
      %p138 = scmp.eq.s32.totalorder %s30, 1
      %p139 = por %p137, %p138
      %p140 = scmp.ne.s32.totalorder %s132, %s135
      %p141 = scmp.eq.s32.totalorder %s30, 0
      %p142 = por %p140, %p141
      %p143 = scmp.ne.s32.totalorder %s132, %s135
      %p144 = scmp.eq.s32.totalorder %s35, 1
      %p145 = por %p143, %p144
      %p146 = scmp.ne.s32.totalorder %s135, %s136
      %p147 = scmp.eq.s32.totalorder %s35, 0
      %p148 = por %p146, %p147
      %p149 = scmp.ne.s32.totalorder %s135, %s136
      %p150 = scmp.eq.s32.totalorder %s36, 1
      %p151 = por %p149, %p150
      %p153 = scmp.ne.s32.totalorder %s136, %s152
      %p154 = scmp.eq.s32.totalorder %s36, 0
      %p155 = por %p153, %p154
      %s156 = ssub.s32 %s37, %s49
      %s157 = ssub.s32 %s38, %s45
      %s158 = sor.u32 %s156, %s157
      %p159 = scmp.eq.s32.totalorder %s158, 0
      %s161 = sadd.s32 %s160, 1
      %s162 = scalar_select %p159, %s160, %s161
      %p165 = pneg %p159
      %p166 = scmp.eq.s32.totalorder %s30, 1
      %p167 = por %p165, %p166
      %p168 = scmp.ne.s32.totalorder %s160, %s163
      %p169 = scmp.eq.s32.totalorder %s30, 0
      %p170 = por %p168, %p169
      %p171 = scmp.ne.s32.totalorder %s160, %s163
      %p172 = scmp.eq.s32.totalorder %s35, 1
      %p173 = por %p171, %p172
      %p174 = scmp.ne.s32.totalorder %s163, %s164
      %p175 = scmp.eq.s32.totalorder %s35, 0
      %p176 = por %p174, %p175
      %p177 = scmp.ne.s32.totalorder %s163, %s164
      %p178 = scmp.eq.s32.totalorder %s36, 1
      %p179 = por %p177, %p178
      %p181 = scmp.ne.s32.totalorder %s164, %s180
      %p182 = scmp.eq.s32.totalorder %s36, 0
      %p183 = por %p181, %p182
      %s185 = sadd.s32 %s184, 1
      %p188 = scmp.eq.s32.totalorder %s30, 1
      %p189 = scmp.ne.s32.totalorder %s184, %s186
      %p190 = scmp.eq.s32.totalorder %s30, 0
      %p191 = por %p189, %p190
      %p192 = scmp.ne.s32.totalorder %s184, %s186
      %p193 = scmp.eq.s32.totalorder %s35, 1
      %p194 = por %p192, %p193
      %p195 = scmp.ne.s32.totalorder %s186, %s187
      %p196 = scmp.eq.s32.totalorder %s35, 0
      %p197 = por %p195, %p196
      %p198 = scmp.ne.s32.totalorder %s186, %s187
      %p199 = scmp.eq.s32.totalorder %s36, 1
      %p200 = por %p198, %p199
      %p202 = scmp.ne.s32.totalorder %s187, %s201
      %p203 = scmp.eq.s32.totalorder %s36, 0
      %p204 = por %p202, %p203
      %s206 = sadd.s32 %s205, 1
      %p209 = scmp.eq.s32.totalorder %s30, 1
      %p210 = scmp.ne.s32.totalorder %s205, %s207
      %p211 = scmp.eq.s32.totalorder %s30, 0
      %p212 = por %p210, %p211
      %p213 = scmp.ne.s32.totalorder %s205, %s207
      %p214 = scmp.eq.s32.totalorder %s35, 1
      %p215 = por %p213, %p214
      %p216 = scmp.ne.s32.totalorder %s207, %s208
      %p217 = scmp.eq.s32.totalorder %s35, 0
      %p218 = por %p216, %p217
      %p219 = scmp.ne.s32.totalorder %s207, %s208
      %p220 = scmp.eq.s32.totalorder %s36, 1
      %p221 = por %p219, %p220
      %p223 = scmp.ne.s32.totalorder %s208, %s222
      %p224 = scmp.eq.s32.totalorder %s36, 0
      %p225 = por %p223, %p224
      %s227 = sadd.s32 %s226, 1
      %p230 = scmp.eq.s32.totalorder %s30, 1
      %p231 = scmp.ne.s32.totalorder %s226, %s228
      %p232 = scmp.eq.s32.totalorder %s30, 0
      %p233 = por %p231, %p232
      %p234 = scmp.ne.s32.totalorder %s226, %s228
      %p235 = scmp.eq.s32.totalorder %s35, 1
      %p236 = por %p234, %p235
      %p237 = scmp.ne.s32.totalorder %s228, %s229
      %p238 = scmp.eq.s32.totalorder %s35, 0
      %p239 = por %p237, %p238
      %p240 = scmp.ne.s32.totalorder %s228, %s229
      %p241 = scmp.eq.s32.totalorder %s36, 1
      %p242 = por %p240, %p241
      %p244 = scmp.ne.s32.totalorder %s229, %s243
      %p245 = scmp.eq.s32.totalorder %s36, 0
      %p246 = por %p244, %p245
      %s248 = sadd.s32 %s247, 1
      %p251 = scmp.eq.s32.totalorder %s30, 1
      %p252 = scmp.ne.s32.totalorder %s247, %s249
      %p253 = scmp.eq.s32.totalorder %s30, 0
      %p254 = por %p252, %p253
      %p255 = scmp.ne.s32.totalorder %s247, %s249
      %p256 = scmp.eq.s32.totalorder %s35, 1
      %p257 = por %p255, %p256
      %p258 = scmp.ne.s32.totalorder %s249, %s250
      %p259 = scmp.eq.s32.totalorder %s35, 0
      %p260 = por %p258, %p259
      %p261 = scmp.ne.s32.totalorder %s249, %s250
      %p262 = scmp.eq.s32.totalorder %s36, 1
      %p263 = por %p261, %p262
      %p265 = scmp.ne.s32.totalorder %s250, %s264
      %p266 = scmp.eq.s32.totalorder %s36, 0
      %p267 = por %p265, %p266
      %s269 = sadd.s32 %s268, 1
      %p272 = scmp.eq.s32.totalorder %s30, 1
      %p273 = scmp.ne.s32.totalorder %s268, %s270
      %p274 = scmp.eq.s32.totalorder %s30, 0
      %p275 = por %p273, %p274
      %p276 = scmp.ne.s32.totalorder %s268, %s270
      %p277 = scmp.eq.s32.totalorder %s35, 1
      %p278 = por %p276, %p277
      %p279 = scmp.ne.s32.totalorder %s270, %s271
      %p280 = scmp.eq.s32.totalorder %s35, 0
      %p281 = por %p279, %p280
      %p282 = scmp.ne.s32.totalorder %s270, %s271
      %p283 = scmp.eq.s32.totalorder %s36, 1
      %p284 = por %p282, %p283
      %p286 = scmp.ne.s32.totalorder %s271, %s285
      %p287 = scmp.eq.s32.totalorder %s36, 0
      %p288 = por %p286, %p287
      %s290 = sadd.s32 %s289, 1
      %p293 = scmp.eq.s32.totalorder %s30, 1
      %p294 = scmp.ne.s32.totalorder %s289, %s291
      %p295 = scmp.eq.s32.totalorder %s30, 0
      %p296 = por %p294, %p295
      %p297 = scmp.ne.s32.totalorder %s289, %s291
      %p298 = scmp.eq.s32.totalorder %s35, 1
      %p299 = por %p297, %p298
      %p300 = scmp.ne.s32.totalorder %s291, %s292
      %p301 = scmp.eq.s32.totalorder %s35, 0
      %p302 = por %p300, %p301
      %p303 = scmp.ne.s32.totalorder %s291, %s292
      %p304 = scmp.eq.s32.totalorder %s36, 1
      %p305 = por %p303, %p304
      %p307 = scmp.ne.s32.totalorder %s292, %s306
      %p308 = scmp.eq.s32.totalorder %s36, 0
      %p309 = por %p307, %p308
      %s310 = ssub.s32 %s37, %s49
      %s311 = ssub.s32 %s38, %s45
      %s312 = sor.u32 %s310, %s311
      %p313 = scmp.eq.s32.totalorder %s312, 0
      %s315 = sadd.s32 %s314, 1
      %s316 = scalar_select %p313, %s314, %s315
      %p319 = pneg %p313
      %p320 = scmp.eq.s32.totalorder %s30, 1
      %p321 = por %p319, %p320
      %p322 = scmp.ne.s32.totalorder %s314, %s317
      %p323 = scmp.eq.s32.totalorder %s30, 0
      %p324 = por %p322, %p323
      %p325 = scmp.ne.s32.totalorder %s314, %s317
      %p326 = scmp.eq.s32.totalorder %s35, 1
      %p327 = por %p325, %p326
      %p328 = scmp.ne.s32.totalorder %s317, %s318
      %p329 = scmp.eq.s32.totalorder %s35, 0
      %p330 = por %p328, %p329
      %p331 = scmp.ne.s32.totalorder %s317, %s318
      %p332 = scmp.eq.s32.totalorder %s36, 1
      %p333 = por %p331, %p332
      %p335 = scmp.ne.s32.totalorder %s318, %s334
      %p336 = scmp.eq.s32.totalorder %s36, 0
      %p337 = por %p335, %p336
      %p338 = scmp.le.s32.totalorder 1, %s30
      %p339 = scmp.lt.s32.totalorder %s30, 3
      %p340 = pnand %p338, %p339
      %p341 = pneg %p340
      // Predicated region
      $region9: #{ground_vqa_forward.3} parent=5 // pred_check
        _
      $region10: #{ground_vqa_forward.3} parent=5 // pred_check_branch
        %343 = sbr.rel (%p340) target = $region12
      $region11: #{ground_vqa_forward.3} parent=5 // pred_region
        %s344 = ssub.s32 %s30, 1
        // Predicated region
        $region13: #{ground_vqa_forward.3} parent=11 // pred_check
          %p345 = pneg %p94
        $region14: #{ground_vqa_forward.3} parent=11 // pred_check_branch
          %347 = sbr.rel (%p345) target = $region16
        $region15: #{ground_vqa_forward.3} parent=11 // pred_region
          %s349 = ssub.s32 64, 64
          %350 = vsyncadd [#allocation6], %s349
          %s351 = smul.addr %s40, 64
          %s352 = scalar_lea.hbm %s1, %s351
          %s354 = sshll.u32 [#allocation5], 4
          %s355 = int_to_ptr.vmem [resolvable:$true] %s354
          %357 = dma.hbm_to_vmem [thread:$0]  %s352, 64, %s355, [#allocation6]
        $region16: #{ground_vqa_forward.3} parent=11 // pred_fallthru
          _
        // Predicated region
        $region17: #{ground_vqa_forward.3} parent=11 // pred_check
          %p358 = pneg %p120
        $region18: #{ground_vqa_forward.3} parent=11 // pred_check_branch
          %360 = sbr.rel (%p358) target = $region20
        $region19: #{ground_vqa_forward.3} parent=11 // pred_region
          %s362 = ssub.s32 128, 128
          %363 = vsyncadd [#allocation6], %s362
          %s364 = smul.addr %s40, 128
          %s365 = scalar_lea.hbm %s2, %s364
          %s367 = sshll.u32 [#allocation7], 4
          %s368 = int_to_ptr.vmem [resolvable:$true] %s367
          %370 = dma.hbm_to_vmem [thread:$0]  %s365, 128, %s368, [#allocation6]
        $region20: #{ground_vqa_forward.3} parent=11 // pred_fallthru
          _
        // Predicated region
        $region21: #{ground_vqa_forward.3} parent=11 // pred_check
          %p371 = pneg %p197
        $region22: #{ground_vqa_forward.3} parent=11 // pred_check_branch
          %373 = sbr.rel (%p371) target = $region24
        $region23: #{ground_vqa_forward.3} parent=11 // pred_region
          %s375 = ssub.s32 512, 512
          %376 = vsyncadd [#allocation12], %s375
          %s377 = sshll.u32 [#allocation11], 4
          %s378 = int_to_ptr.vmem [resolvable:$true] %s377
          %383 = dma.hbm_to_vmem [thread:$0]  %s5, 512, %s378, [#allocation12], 64, 64, 4
        $region24: #{ground_vqa_forward.3} parent=11 // pred_fallthru
          _
        // Predicated region
        $region25: #{ground_vqa_forward.3} parent=11 // pred_check
          %p384 = pneg %p218
        $region26: #{ground_vqa_forward.3} parent=11 // pred_check_branch
          %386 = sbr.rel (%p384) target = $region28
        $region27: #{ground_vqa_forward.3} parent=11 // pred_region
          %s388 = ssub.s32 512, 512
          %389 = vsyncadd [#allocation12], %s388
          %s390 = sshll.u32 [#allocation13], 4
          %s391 = int_to_ptr.vmem [resolvable:$true] %s390
          %396 = dma.hbm_to_vmem [thread:$0]  %s6, 512, %s391, [#allocation12], 64, 64, 4
        $region28: #{ground_vqa_forward.3} parent=11 // pred_fallthru
          _
        // Predicated region
        $region29: #{ground_vqa_forward.3} parent=11 // pred_check
          %p397 = pneg %p239
        $region30: #{ground_vqa_forward.3} parent=11 // pred_check_branch
          %399 = sbr.rel (%p397) target = $region32
        $region31: #{ground_vqa_forward.3} parent=11 // pred_region
          %s401 = ssub.s32 16, 16
          %402 = vsyncadd [#allocation15], %s401
          %s404 = sshll.u32 [#allocation14], 4
          %s405 = int_to_ptr.vmem [resolvable:$true] %s404
          %407 = dma.hbm_to_vmem [thread:$0]  %s7, 16, %s405, [#allocation15]
        $region32: #{ground_vqa_forward.3} parent=11 // pred_fallthru
          _
        // Predicated region
        $region33: #{ground_vqa_forward.3} parent=11 // pred_check
          %p408 = pneg %p260
        $region34: #{ground_vqa_forward.3} parent=11 // pred_check_branch
          %410 = sbr.rel (%p408) target = $region36
        $region35: #{ground_vqa_forward.3} parent=11 // pred_region
          %s412 = ssub.s32 512, 512
          %413 = vsyncadd [#allocation15], %s412
          %s414 = sshll.u32 [#allocation16], 4
          %s415 = int_to_ptr.vmem [resolvable:$true] %s414
          %420 = dma.hbm_to_vmem [thread:$0]  %s8, 512, %s415, [#allocation15], 64, 64, 4
        $region36: #{ground_vqa_forward.3} parent=11 // pred_fallthru
          _
        // Predicated region
        $region37: #{ground_vqa_forward.3} parent=11 // pred_check
          %p421 = pneg %p281
        $region38: #{ground_vqa_forward.3} parent=11 // pred_check_branch
          %423 = sbr.rel (%p421) target = $region40
        $region39: #{ground_vqa_forward.3} parent=11 // pred_region
          %s425 = ssub.s32 128, 128
          %426 = vsyncadd [#allocation18], %s425
          %s427 = sshll.u32 [#allocation17], 4
          %s428 = int_to_ptr.vmem [resolvable:$true] %s427
          %433 = dma.hbm_to_vmem [thread:$0]  %s9, 128, %s428, [#allocation18], 64, 64, 4
        $region40: #{ground_vqa_forward.3} parent=11 // pred_fallthru
          _
        // Predicated region
        $region41: #{ground_vqa_forward.3} parent=11 // pred_check
          %p434 = pneg %p302
        $region42: #{ground_vqa_forward.3} parent=11 // pred_check_branch
          %436 = sbr.rel (%p434) target = $region44
        $region43: #{ground_vqa_forward.3} parent=11 // pred_region
          %s438 = ssub.s32 16, 16
          %439 = vsyncadd [#allocation18], %s438
          %s441 = sshll.u32 [#allocation19], 4
          %s442 = int_to_ptr.vmem [resolvable:$true] %s441
          %444 = dma.hbm_to_vmem [thread:$0]  %s10, 16, %s442, [#allocation18]
        $region44: #{ground_vqa_forward.3} parent=11 // pred_fallthru
          _
      $region12: #{ground_vqa_forward.3} parent=5 // pred_fallthru
        _
      %p445 = scmp.lt.s32.totalorder %s30, 2
      // Predicated region
      $region45: #{ground_vqa_forward.3} parent=5 // pred_check
        %p446 = pneg %p445
      $region46: #{ground_vqa_forward.3} parent=5 // pred_check_branch
        %448 = sbr.rel (%p446) target = $region48
      $region47: #{ground_vqa_forward.3} parent=5 // pred_region
        // Predicated region
        $region49: #{ground_vqa_forward.3} parent=47 // pred_check
          %p449 = pneg %p62
        $region50: #{ground_vqa_forward.3} parent=47 // pred_check_branch
          %451 = sbr.rel (%p449) target = $region52
        $region51: #{ground_vqa_forward.3} parent=47 // pred_region
          %s452 = sand.u32 %s52, 1
          %s453 = scalar_lea.sflag [#allocation3], %s452
          %s454 = sand.u32 %s52, 1
          %s455 = smul.addr %s454, 4
          %s456 = scalar_lea.vmem [#allocation2], %s455
          %s458 = ssub.s32 64, 64
          %459 = vsyncadd %s453, %s458
          %s460 = smul.addr %s37, 64
          %s461 = scalar_lea.hbm %s0, %s460
          %s463 = sshll.u32 %s456, 4
          %s464 = int_to_ptr.vmem [resolvable:$true] %s463
          %466 = dma.hbm_to_vmem [thread:$0]  %s461, 64, %s464, %s453
        $region52: #{ground_vqa_forward.3} parent=47 // pred_fallthru
          _
        // Predicated region
        $region53: #{ground_vqa_forward.3} parent=47 // pred_check
          %p467 = pneg %p142
        $region54: #{ground_vqa_forward.3} parent=47 // pred_check_branch
          %469 = sbr.rel (%p467) target = $region56
        $region55: #{ground_vqa_forward.3} parent=47 // pred_region
          %s470 = sand.u32 %s30, 1
          %s471 = scalar_lea.sflag [#allocation9], %s470
          %s472 = sand.u32 %s132, 1
          %s473 = smul.addr %s472, 8
          %s474 = scalar_lea.vmem [#allocation8], %s473
          %s476 = ssub.s32 128, 128
          %477 = vsyncadd %s471, %s476
          %s478 = sadd.s32 %s38, %s37
          %s479 = smul.addr %s478, 128
          %s480 = scalar_lea.hbm %s3, %s479
          %s482 = sshll.u32 %s474, 4
          %s483 = int_to_ptr.vmem [resolvable:$true] %s482
          %485 = dma.hbm_to_vmem [thread:$0]  %s480, 128, %s483, %s471
        $region56: #{ground_vqa_forward.3} parent=47 // pred_fallthru
          _
        // Predicated region
        $region57: #{ground_vqa_forward.3} parent=47 // pred_check
          %p486 = pneg %p170
        $region58: #{ground_vqa_forward.3} parent=47 // pred_check_branch
          %488 = sbr.rel (%p486) target = $region60
        $region59: #{ground_vqa_forward.3} parent=47 // pred_region
          %s489 = sand.u32 %s30, 1
          %s490 = scalar_lea.sflag [#allocation9], %s489
          %s491 = sand.u32 %s160, 1
          %s492 = smul.addr %s491, 4
          %s493 = scalar_lea.vmem [#allocation10], %s492
          %s495 = ssub.s32 64, 64
          %496 = vsyncadd %s490, %s495
          %s497 = sadd.s32 %s38, %s37
          %s498 = smul.addr %s497, 64
          %s499 = scalar_lea.hbm %s4, %s498
          %s501 = sshll.u32 %s493, 4
          %s502 = int_to_ptr.vmem [resolvable:$true] %s501
          %504 = dma.hbm_to_vmem [thread:$0]  %s499, 64, %s502, %s490
        $region60: #{ground_vqa_forward.3} parent=47 // pred_fallthru
          _
      $region48: #{ground_vqa_forward.3} parent=5 // pred_fallthru
        _
      %p505 = scmp.le.s32.totalorder 1, %s30
      %p506 = scmp.lt.s32.totalorder %s30, 3
      %p507 = pnand %p505, %p506
      %p508 = pneg %p507
      // Predicated region
      $region61: #{ground_vqa_forward.3} parent=5 // pred_check
        _
      $region62: #{ground_vqa_forward.3} parent=5 // pred_check_branch
        %510 = sbr.rel (%p507) target = $region64
      $region63: #{ground_vqa_forward.3} parent=5 // pred_region
        %s511 = ssub.s32 %s30, 1
        %s512 = sand.u32 %s55, 1
        %s513 = scalar_lea.sflag [#allocation3], %s512
        %s514 = sand.u32 %s55, 1
        %s515 = smul.addr %s514, 4
        %s516 = scalar_lea.vmem [#allocation2], %s515
        // Predicated region
        $region65: #{ground_vqa_forward.3} parent=63 // pred_check
          %p517 = pneg %p68
        $region66: #{ground_vqa_forward.3} parent=63 // pred_check_branch
          %519 = sbr.rel (%p517) target = $region68
        $region67: #{ground_vqa_forward.3} parent=63 // pred_region
          %520 = dma.done %s513, 64
        $region68: #{ground_vqa_forward.3} parent=63 // pred_fallthru
          _
        // Predicated region
        $region69: #{ground_vqa_forward.3} parent=63 // pred_check
          %p521 = pneg %p94
        $region70: #{ground_vqa_forward.3} parent=63 // pred_check_branch
          %523 = sbr.rel (%p521) target = $region72
        $region71: #{ground_vqa_forward.3} parent=63 // pred_region
          %524 = dma.done [#allocation6], 64
        $region72: #{ground_vqa_forward.3} parent=63 // pred_fallthru
          _
        // Predicated region
        $region73: #{ground_vqa_forward.3} parent=63 // pred_check
          %p525 = pneg %p120
        $region74: #{ground_vqa_forward.3} parent=63 // pred_check_branch
          %527 = sbr.rel (%p525) target = $region76
        $region75: #{ground_vqa_forward.3} parent=63 // pred_region
          %528 = dma.done [#allocation6], 128
        $region76: #{ground_vqa_forward.3} parent=63 // pred_fallthru
          _
        %s529 = sand.u32 %s35, 1
        %s530 = scalar_lea.sflag [#allocation9], %s529
        %s531 = sand.u32 %s135, 1
        %s532 = smul.addr %s531, 8
        %s533 = scalar_lea.vmem [#allocation8], %s532
        // Predicated region
        $region77: #{ground_vqa_forward.3} parent=63 // pred_check
          %p534 = pneg %p148
        $region78: #{ground_vqa_forward.3} parent=63 // pred_check_branch
          %536 = sbr.rel (%p534) target = $region80
        $region79: #{ground_vqa_forward.3} parent=63 // pred_region
          %537 = dma.done %s530, 128
        $region80: #{ground_vqa_forward.3} parent=63 // pred_fallthru
          _
        %s538 = sand.u32 %s35, 1
        %s539 = scalar_lea.sflag [#allocation9], %s538
        %s540 = sand.u32 %s163, 1
        %s541 = smul.addr %s540, 4
        %s542 = scalar_lea.vmem [#allocation10], %s541
        // Predicated region
        $region81: #{ground_vqa_forward.3} parent=63 // pred_check
          %p543 = pneg %p176
        $region82: #{ground_vqa_forward.3} parent=63 // pred_check_branch
          %545 = sbr.rel (%p543) target = $region84
        $region83: #{ground_vqa_forward.3} parent=63 // pred_region
          %546 = dma.done %s539, 64
        $region84: #{ground_vqa_forward.3} parent=63 // pred_fallthru
          _
        // Predicated region
        $region85: #{ground_vqa_forward.3} parent=63 // pred_check
          %p547 = pneg %p197
        $region86: #{ground_vqa_forward.3} parent=63 // pred_check_branch
          %549 = sbr.rel (%p547) target = $region88
        $region87: #{ground_vqa_forward.3} parent=63 // pred_region
          %550 = dma.done [#allocation12], 512
        $region88: #{ground_vqa_forward.3} parent=63 // pred_fallthru
          _
        // Predicated region
        $region89: #{ground_vqa_forward.3} parent=63 // pred_check
          %p551 = pneg %p218
        $region90: #{ground_vqa_forward.3} parent=63 // pred_check_branch
          %553 = sbr.rel (%p551) target = $region92
        $region91: #{ground_vqa_forward.3} parent=63 // pred_region
          %554 = dma.done [#allocation12], 512
        $region92: #{ground_vqa_forward.3} parent=63 // pred_fallthru
          _
        // Predicated region
        $region93: #{ground_vqa_forward.3} parent=63 // pred_check
          %p555 = pneg %p239
        $region94: #{ground_vqa_forward.3} parent=63 // pred_check_branch
          %557 = sbr.rel (%p555) target = $region96
        $region95: #{ground_vqa_forward.3} parent=63 // pred_region
          %558 = dma.done [#allocation15], 16
        $region96: #{ground_vqa_forward.3} parent=63 // pred_fallthru
          _
        // Predicated region
        $region97: #{ground_vqa_forward.3} parent=63 // pred_check
          %p559 = pneg %p260
        $region98: #{ground_vqa_forward.3} parent=63 // pred_check_branch
          %561 = sbr.rel (%p559) target = $region100
        $region99: #{ground_vqa_forward.3} parent=63 // pred_region
          %562 = dma.done [#allocation15], 512
        $region100: #{ground_vqa_forward.3} parent=63 // pred_fallthru
          _
        // Predicated region
        $region101: #{ground_vqa_forward.3} parent=63 // pred_check
          %p563 = pneg %p281
        $region102: #{ground_vqa_forward.3} parent=63 // pred_check_branch
          %565 = sbr.rel (%p563) target = $region104
        $region103: #{ground_vqa_forward.3} parent=63 // pred_region
          %566 = dma.done [#allocation18], 128
        $region104: #{ground_vqa_forward.3} parent=63 // pred_fallthru
          _
        // Predicated region
        $region105: #{ground_vqa_forward.3} parent=63 // pred_check
          %p567 = pneg %p302
        $region106: #{ground_vqa_forward.3} parent=63 // pred_check_branch
          %569 = sbr.rel (%p567) target = $region108
        $region107: #{ground_vqa_forward.3} parent=63 // pred_region
          %570 = dma.done [#allocation18], 16
        $region108: #{ground_vqa_forward.3} parent=63 // pred_fallthru
          _
        %s571 = sand.u32 %s55, 1
        %s572 = scalar_lea.sflag [#allocation3], %s571
        %s573 = sand.u32 %s55, 1
        %s574 = smul.addr %s573, 4
        %s575 = scalar_lea.vmem [#allocation2], %s574
        %p576 = pneg %p68
        %p577 = pneg %p65
        %p578 = pneg %p94
        %p579 = pneg %p91
        %p580 = pneg %p120
        %p581 = pneg %p117
        %s582 = sand.u32 %s35, 1
        %s583 = scalar_lea.sflag [#allocation9], %s582
        %s584 = sand.u32 %s135, 1
        %s585 = smul.addr %s584, 8
        %s586 = scalar_lea.vmem [#allocation8], %s585
        %p587 = pneg %p148
        %p588 = pneg %p145
        %s589 = sand.u32 %s35, 1
        %s590 = scalar_lea.sflag [#allocation9], %s589
        %s591 = sand.u32 %s163, 1
        %s592 = smul.addr %s591, 4
        %s593 = scalar_lea.vmem [#allocation10], %s592
        %p594 = pneg %p176
        %p595 = pneg %p173
        %p596 = pneg %p197
        %p597 = pneg %p194
        %p598 = pneg %p218
        %p599 = pneg %p215
        %p600 = pneg %p239
        %p601 = pneg %p236
        %p602 = pneg %p260
        %p603 = pneg %p257
        %p604 = pneg %p281
        %p605 = pneg %p278
        %p606 = pneg %p302
        %p607 = pneg %p299
        %p608 = pneg %p330
        %p609 = pneg %p327
        %s610 = sand.u32 %s317, 1
        %s611 = scalar_lea.sflag [#allocation4], %s610
        %s612 = sand.u32 %s317, 1
        %s613 = smul.addr %s612, 4
        %s614 = scalar_lea.vmem [#allocation20], %s613
        %v616 = vld [vmem:[%s516] sm:$0xf]
        %v617 = vld [vmem:[#allocation5] sm:$0xf]
        %v618 = vld [vmem:[#allocation7] sm:$0xff]
        %620 = vset.pattern.permute.xlu0 0
        %621 = vperm.xlu0 %620, %v618
        %v622 = vpop.permute.xlu0 %621
        %vm624 = vcmask 64512
        %v626 = vsel %vm624, %v617, 0
        %vm628 = vcmask 1043456
        %v630 = vsel %vm628, %v616, 0
        %632 = vmatprep.subr.bf16.mxu0 0
        %633 = vmatpush1.bf16.msra.mxu0 %v630
        %634 = vmatprep.subr.bf16.mxu0 0
        %635 = vmatpush1.bf16.msra.mxu0 0
        %636 = vmatprep.subr.bf16.mxu0 0
        %637 = vmatpush1.bf16.msra.mxu0 0
        %638 = vmatprep.subr.bf16.mxu0 0
        %639 = vmatpush1.bf16.msra.mxu0 0
        %640 = vmatprep.subr.bf16.mxu0 0
        %641 = vmatpush1.bf16.msra.mxu0 0
        %642 = vmatprep.subr.bf16.mxu0 0
        %643 = vmatpush1.bf16.msra.mxu0 0
        %644 = vmatprep.subr.bf16.mxu0 0
        %645 = vmatpush1.bf16.msra.mxu0 0
        %646 = vmatprep.subr.bf16.mxu0 0
        %647 = vmatpush1.bf16.msra.mxu0 0
        %648 = vmatprep.subr.bf16.mxu0 0
        %649 = vmatpush1.bf16.msra.mxu0 0
        %650 = vmatprep.subr.bf16.mxu0 0
        %651 = vmatpush1.bf16.msra.mxu0 0
        %652 = vmatprep.subr.bf16.mxu0 0
        %653 = vmatpush1.bf16.msra.mxu0 0
        %654 = vmatprep.subr.bf16.mxu0 0
        %655 = vmatpush1.bf16.msra.mxu0 0
        %656 = vmatprep.subr.bf16.mxu0 0
        %657 = vmatpush1.bf16.msra.mxu0 0
        %658 = vmatprep.subr.bf16.mxu0 0
        %659 = vmatpush1.bf16.msra.mxu0 0
        %660 = vmatprep.subr.bf16.mxu0 0
        %661 = vmatpush1.bf16.msra.mxu0 0
        %662 = vmatprep.subr.bf16.mxu0 0
        %663 = vmatpush1.bf16.msra.mxu0 0
        %664 = vmatprep.mubr.bf16.mxu0 0
        %665 = vmatmul.mubr.bf16.gmra.mrb[0].mxu0 %v626
        %v666 = vpop.f32.mrb[0].mxu0
        %v667 = vadd.f32 %v622, %v666
        %v668 = vpop.f32.mrb[0].mxu0
        %v669 = vpop.f32.mrb[0].mxu0
        %v670 = vpop.f32.mrb[0].mxu0
        %671 = vdwg.mxu0
        %v672 = vld [vmem:[%s533] sm:$0xff]
        %674 = vset.pattern.permute.xlu0 0
        %675 = vperm.xlu0 %674, %v672
        %v676 = vpop.permute.xlu0 %675
        %v678 = vmul.f32 %v667, %v676
        %v679 = vld [vmem:[#allocation11] sm:$0xf]
        %v680 = vld [vmem:[#allocation11 + $0x4] sm:$0xf]
        %v681 = vld [vmem:[#allocation11 + $0x8] sm:$0xf]
        %v682 = vld [vmem:[#allocation11 + $0xc] sm:$0xf]
        %v683 = vld [vmem:[#allocation11 + $0x10] sm:$0xf]
        %v684 = vld [vmem:[#allocation11 + $0x14] sm:$0xf]
        %v685 = vld [vmem:[#allocation11 + $0x18] sm:$0xf]
        %v686 = vld [vmem:[#allocation11 + $0x1c] sm:$0xf]
        %v687 = vpack.c.bf16 %v678, %v678
        %v688 = vld [vmem:[#allocation13] sm:$0xf]
        %v689 = vld [vmem:[#allocation13 + $0x4] sm:$0xf]
        %v690 = vld [vmem:[#allocation13 + $0x8] sm:$0xf]
        %v691 = vld [vmem:[#allocation13 + $0xc] sm:$0xf]
        %v692 = vld [vmem:[#allocation13 + $0x10] sm:$0xf]
        %v693 = vld [vmem:[#allocation13 + $0x14] sm:$0xf]
        %v694 = vld [vmem:[#allocation13 + $0x18] sm:$0xf]
        %v695 = vld [vmem:[#allocation13 + $0x1c] sm:$0xf]
        %v704 = vunpack.c.l.b16 %v688
        %v705 = vunpack.c.l.b16 %v689
        %v706 = vunpack.c.l.b16 %v690
        %v707 = vunpack.c.l.b16 %v691
        %v708 = vunpack.c.l.b16 %v692
        %v709 = vunpack.c.l.b16 %v693
        %v710 = vunpack.c.l.b16 %v694
        %v711 = vunpack.c.l.b16 %v695
        %v712 = vpack.c.b16 %v705, %v704
        %v713 = vpack.c.b16 %v707, %v706
        %v714 = vpack.c.b16 %v709, %v708
        %v715 = vpack.c.b16 %v711, %v710
        %vm720 = vcmask 523264
        %v722 = vsel %vm720, %v687, 0
        %724 = vmatprep.subr.bf16.mxu0 0
        %725 = vmatpush1.bf16.msra.mxu0 %v712
        %726 = vmatprep.subr.bf16.mxu0 0
        %727 = vmatpush1.bf16.msra.mxu0 %v713
        %728 = vmatprep.subr.bf16.mxu0 0
        %729 = vmatpush1.bf16.msra.mxu0 %v714
        %730 = vmatprep.subr.bf16.mxu0 0
        %731 = vmatpush1.bf16.msra.mxu0 %v715
        %732 = vmatprep.subr.bf16.mxu0 0
        %733 = vmatpush1.bf16.msra.mxu0 0
        %734 = vmatprep.subr.bf16.mxu0 0
        %735 = vmatpush1.bf16.msra.mxu0 0
        %736 = vmatprep.subr.bf16.mxu0 0
        %737 = vmatpush1.bf16.msra.mxu0 0
        %738 = vmatprep.subr.bf16.mxu0 0
        %739 = vmatpush1.bf16.msra.mxu0 0
        %740 = vmatprep.subr.bf16.mxu0 0
        %741 = vmatpush1.bf16.msra.mxu0 0
        %742 = vmatprep.subr.bf16.mxu0 0
        %743 = vmatpush1.bf16.msra.mxu0 0
        %744 = vmatprep.subr.bf16.mxu0 0
        %745 = vmatpush1.bf16.msra.mxu0 0
        %746 = vmatprep.subr.bf16.mxu0 0
        %747 = vmatpush1.bf16.msra.mxu0 0
        %748 = vmatprep.subr.bf16.mxu0 0
        %749 = vmatpush1.bf16.msra.mxu0 0
        %750 = vmatprep.subr.bf16.mxu0 0
        %751 = vmatpush1.bf16.msra.mxu0 0
        %752 = vmatprep.subr.bf16.mxu0 0
        %753 = vmatpush1.bf16.msra.mxu0 0
        %754 = vmatprep.subr.bf16.mxu0 0
        %755 = vmatpush1.bf16.msra.mxu0 0
        %756 = vmatprep.mubr.bf16.mxu0 0
        %757 = vmatmul.mubr.bf16.gmra.mrb[0].mxu0 %v722
        %v758 = vpop.f32.mrb[0].mxu0
        %v759 = vadd.f32 0.0, %v758
        %v760 = vpop.f32.mrb[0].mxu0
        %v761 = vpop.f32.mrb[0].mxu0
        %v762 = vpop.f32.mrb[0].mxu0
        %763 = vdwg.mxu0
        %v772 = vunpack.c.l.b16 %v679
        %v773 = vunpack.c.l.b16 %v680
        %v774 = vunpack.c.l.b16 %v681
        %v775 = vunpack.c.l.b16 %v682
        %v776 = vunpack.c.l.b16 %v683
        %v777 = vunpack.c.l.b16 %v684
        %v778 = vunpack.c.l.b16 %v685
        %v779 = vunpack.c.l.b16 %v686
        %v780 = vpack.c.b16 %v773, %v772
        %v781 = vpack.c.b16 %v775, %v774
        %v782 = vpack.c.b16 %v777, %v776
        %v783 = vpack.c.b16 %v779, %v778
        %v788 = vsel %vm720, %v616, 0
        %790 = vmatprep.subr.bf16.mxu0 0
        %791 = vmatpush1.bf16.msra.mxu0 %v780
        %792 = vmatprep.subr.bf16.mxu0 0
        %793 = vmatpush1.bf16.msra.mxu0 %v781
        %794 = vmatprep.subr.bf16.mxu0 0
        %795 = vmatpush1.bf16.msra.mxu0 %v782
        %796 = vmatprep.subr.bf16.mxu0 0
        %797 = vmatpush1.bf16.msra.mxu0 %v783
        %798 = vmatprep.subr.bf16.mxu0 0
        %799 = vmatpush1.bf16.msra.mxu0 0
        %800 = vmatprep.subr.bf16.mxu0 0
        %801 = vmatpush1.bf16.msra.mxu0 0
        %802 = vmatprep.subr.bf16.mxu0 0
        %803 = vmatpush1.bf16.msra.mxu0 0
        %804 = vmatprep.subr.bf16.mxu0 0
        %805 = vmatpush1.bf16.msra.mxu0 0
        %806 = vmatprep.subr.bf16.mxu0 0
        %807 = vmatpush1.bf16.msra.mxu0 0
        %808 = vmatprep.subr.bf16.mxu0 0
        %809 = vmatpush1.bf16.msra.mxu0 0
        %810 = vmatprep.subr.bf16.mxu0 0
        %811 = vmatpush1.bf16.msra.mxu0 0
        %812 = vmatprep.subr.bf16.mxu0 0
        %813 = vmatpush1.bf16.msra.mxu0 0
        %814 = vmatprep.subr.bf16.mxu0 0
        %815 = vmatpush1.bf16.msra.mxu0 0
        %816 = vmatprep.subr.bf16.mxu0 0
        %817 = vmatpush1.bf16.msra.mxu0 0
        %818 = vmatprep.subr.bf16.mxu0 0
        %819 = vmatpush1.bf16.msra.mxu0 0
        %820 = vmatprep.subr.bf16.mxu0 0
        %821 = vmatpush1.bf16.msra.mxu0 0
        %822 = vmatprep.mubr.bf16.mxu0 0
        %823 = vmatmul.mubr.bf16.gmra.mrb[0].mxu0 %v788
        %v824 = vpop.f32.mrb[0].mxu0
        %v825 = vadd.f32 %v759, %v824
        %v826 = vpop.f32.mrb[0].mxu0
        %v827 = vpop.f32.mrb[0].mxu0
        %v828 = vpop.f32.mrb[0].mxu0
        %829 = vdwg.mxu0
        %v830 = vld [vmem:[#allocation14] sm:$0x1]
        %v832 = vlaneseq
        %v833 = vshrl.u32 %v832, 7
        %v834 = vsub.s32 0, %v833
        %v835 = vrot.slane %v830, %v834
        %v837 = vadd.f32 %v825, %v835
        %v838 = vunpack.c.l.bf16 %v616
        %v839 = vmul.f32 %v837, 0.5
        %v840 = vmul.f32 %v837, %v837
        %v841 = vmul.f32 %v840, %v837
        %v842 = vmul.f32 %v841, 0.044715
        %v843 = vadd.f32 %v837, %v842
        %v844 = vmul.f32 %v843, 0.7978846
        %v845 = vtanh.pop %v844
        %v846 = vadd.f32 %v845, 1.0
        %v847 = vmul.f32 %v839, %v846
        %v848 = vadd.f32 %v838, %v847
        %v849 = vpack.c.bf16 %v848, %v848
        %v850 = vld [vmem:[#allocation16] sm:$0xf]
        %v851 = vld [vmem:[#allocation16 + $0x4] sm:$0xf]
        %v852 = vld [vmem:[#allocation16 + $0x8] sm:$0xf]
        %v853 = vld [vmem:[#allocation16 + $0xc] sm:$0xf]
        %v854 = vld [vmem:[#allocation16 + $0x10] sm:$0xf]
        %v855 = vld [vmem:[#allocation16 + $0x14] sm:$0xf]
        %v856 = vld [vmem:[#allocation16 + $0x18] sm:$0xf]
        %v857 = vld [vmem:[#allocation16 + $0x1c] sm:$0xf]
        %v858 = vld [vmem:[%s542] sm:$0xf]
        %v859 = vld [vmem:[#allocation17] sm:$0xf]
        %v860 = vld [vmem:[#allocation17 + $0x4] sm:$0xf]
        %v863 = vunpack.c.l.b16 %v859
        %v864 = vunpack.c.l.b16 %v860
        %v865 = vpack.c.b16 %v864, %v863
        %vm867 = vcmask 130048
        %v869 = vsel %vm867, %v858, 0
        %871 = vmatprep.subr.bf16.mxu0 0
        %872 = vmatpush1.bf16.msra.mxu0 %v865
        %873 = vmatprep.subr.bf16.mxu0 0
        %874 = vmatpush1.bf16.msra.mxu0 0
        %875 = vmatprep.subr.bf16.mxu0 0
        %876 = vmatpush1.bf16.msra.mxu0 0
        %877 = vmatprep.subr.bf16.mxu0 0
        %878 = vmatpush1.bf16.msra.mxu0 0
        %879 = vmatprep.subr.bf16.mxu0 0
        %880 = vmatpush1.bf16.msra.mxu0 0
        %881 = vmatprep.subr.bf16.mxu0 0
        %882 = vmatpush1.bf16.msra.mxu0 0
        %883 = vmatprep.subr.bf16.mxu0 0
        %884 = vmatpush1.bf16.msra.mxu0 0
        %885 = vmatprep.subr.bf16.mxu0 0
        %886 = vmatpush1.bf16.msra.mxu0 0
        %887 = vmatprep.subr.bf16.mxu0 0
        %888 = vmatpush1.bf16.msra.mxu0 0
        %889 = vmatprep.subr.bf16.mxu0 0
        %890 = vmatpush1.bf16.msra.mxu0 0
        %891 = vmatprep.subr.bf16.mxu0 0
        %892 = vmatpush1.bf16.msra.mxu0 0
        %893 = vmatprep.subr.bf16.mxu0 0
        %894 = vmatpush1.bf16.msra.mxu0 0
        %895 = vmatprep.subr.bf16.mxu0 0
        %896 = vmatpush1.bf16.msra.mxu0 0
        %897 = vmatprep.subr.bf16.mxu0 0
        %898 = vmatpush1.bf16.msra.mxu0 0
        %899 = vmatprep.subr.bf16.mxu0 0
        %900 = vmatpush1.bf16.msra.mxu0 0
        %901 = vmatprep.subr.bf16.mxu0 0
        %902 = vmatpush1.bf16.msra.mxu0 0
        %903 = vmatprep.mubr.bf16.mxu0 0
        %904 = vmatmul.mubr.bf16.gmra.mrb[0].mxu0 %v869
        %v905 = vpop.f32.mrb[0].mxu0
        %v906 = vadd.f32 0.0, %v905
        %v907 = vpop.f32.mrb[0].mxu0
        %v908 = vpop.f32.mrb[0].mxu0
        %v909 = vpop.f32.mrb[0].mxu0
        %910 = vdwg.mxu0
        %v919 = vunpack.c.l.b16 %v850
        %v920 = vunpack.c.l.b16 %v851
        %v921 = vunpack.c.l.b16 %v852
        %v922 = vunpack.c.l.b16 %v853
        %v923 = vunpack.c.l.b16 %v854
        %v924 = vunpack.c.l.b16 %v855
        %v925 = vunpack.c.l.b16 %v856
        %v926 = vunpack.c.l.b16 %v857
        %v927 = vpack.c.b16 %v920, %v919
        %v928 = vpack.c.b16 %v922, %v921
        %v929 = vpack.c.b16 %v924, %v923
        %v930 = vpack.c.b16 %v926, %v925
        %v936 = vsel %vm720, %v849, 0
        %938 = vmatprep.subr.bf16.mxu0 0
        %939 = vmatpush1.bf16.msra.mxu0 %v927
        %940 = vmatprep.subr.bf16.mxu0 0
        %941 = vmatpush1.bf16.msra.mxu0 %v928
        %942 = vmatprep.subr.bf16.mxu0 0
        %943 = vmatpush1.bf16.msra.mxu0 %v929
        %944 = vmatprep.subr.bf16.mxu0 0
        %945 = vmatpush1.bf16.msra.mxu0 %v930
        %946 = vmatprep.subr.bf16.mxu0 0
        %947 = vmatpush1.bf16.msra.mxu0 0
        %948 = vmatprep.subr.bf16.mxu0 0
        %949 = vmatpush1.bf16.msra.mxu0 0
        %950 = vmatprep.subr.bf16.mxu0 0
        %951 = vmatpush1.bf16.msra.mxu0 0
        %952 = vmatprep.subr.bf16.mxu0 0
        %953 = vmatpush1.bf16.msra.mxu0 0
        %954 = vmatprep.subr.bf16.mxu0 0
        %955 = vmatpush1.bf16.msra.mxu0 0
        %956 = vmatprep.subr.bf16.mxu0 0
        %957 = vmatpush1.bf16.msra.mxu0 0
        %958 = vmatprep.subr.bf16.mxu0 0
        %959 = vmatpush1.bf16.msra.mxu0 0
        %960 = vmatprep.subr.bf16.mxu0 0
        %961 = vmatpush1.bf16.msra.mxu0 0
        %962 = vmatprep.subr.bf16.mxu0 0
        %963 = vmatpush1.bf16.msra.mxu0 0
        %964 = vmatprep.subr.bf16.mxu0 0
        %965 = vmatpush1.bf16.msra.mxu0 0
        %966 = vmatprep.subr.bf16.mxu0 0
        %967 = vmatpush1.bf16.msra.mxu0 0
        %968 = vmatprep.subr.bf16.mxu0 0
        %969 = vmatpush1.bf16.msra.mxu0 0
        %970 = vmatprep.mubr.bf16.mxu0 0
        %971 = vmatmul.mubr.bf16.gmra.mrb[0].mxu0 %v936
        %v972 = vpop.f32.mrb[0].mxu0
        %v973 = vadd.f32 %v906, %v972
        %v974 = vpop.f32.mrb[0].mxu0
        %v975 = vpop.f32.mrb[0].mxu0
        %v976 = vpop.f32.mrb[0].mxu0
        %977 = vdwg.mxu0
        %v978 = vld [vmem:[#allocation19] sm:$0x1]
        %v980 = vlaneseq
        %v981 = vshrl.u32 %v980, 7
        %v982 = vsub.s32 0, %v981
        %v983 = vrot.slane %v978, %v982
        %v985 = vadd.f32 %v973, %v983
        %v986 = vmul.f32 %v985, 0.5
        %v987 = vmul.f32 %v985, %v985
        %v988 = vmul.f32 %v987, %v985
        %v989 = vmul.f32 %v988, 0.044715
        %v990 = vadd.f32 %v985, %v989
        %v991 = vmul.f32 %v990, 0.7978846
        %v992 = vtanh.pop %v991
        %v993 = vadd.f32 %v992, 1.0
        %v994 = vmul.f32 %v986, %v993
        %v995 = vadd.f32 %v848, %v994
        %v996 = vpack.c.bf16 %v995, %v995
        %vm997 = vcmask 519168
        %998 = vst.msk [vmem:[%s614] sm:$0xf] %vm997, %v996
        %s999 = sand.u32 %s317, 1
        %s1000 = scalar_lea.sflag [#allocation4], %s999
        %s1001 = sand.u32 %s317, 1
        %s1002 = smul.addr %s1001, 4
        %s1003 = scalar_lea.vmem [#allocation20], %s1002
        // Predicated region
        $region109: #{ground_vqa_forward.3} parent=63 // pred_check
          %p1004 = pneg %p327
        $region110: #{ground_vqa_forward.3} parent=63 // pred_check_branch
          %1006 = sbr.rel (%p1004) target = $region112
        $region111: #{ground_vqa_forward.3} parent=63 // pred_region
          %s1008 = ssub.s32 64, 64
          %1009 = vsyncadd %s1000, %s1008
          %s1010 = sadd.s32 %s40, %s39
          %s1011 = smul.addr %s1010, 64
          %s1012 = scalar_lea.hbm %s11, %s1011
          %s1014 = sshll.u32 %s1003, 4
          %s1015 = int_to_ptr.vmem [resolvable:$true] %s1014
          %1017 = dma.vmem_to_hbm [thread:$0]  %s1015, 64, %s1012, %s1000
        $region112: #{ground_vqa_forward.3} parent=63 // pred_fallthru
          _
      $region64: #{ground_vqa_forward.3} parent=5 // pred_fallthru
        _
      %p1018 = scmp.le.s32.totalorder 2, %s30
      // Predicated region
      $region113: #{ground_vqa_forward.3} parent=5 // pred_check
        %p1019 = pneg %p1018
      $region114: #{ground_vqa_forward.3} parent=5 // pred_check_branch
        %1021 = sbr.rel (%p1019) target = $region116
      $region115: #{ground_vqa_forward.3} parent=5 // pred_region
        %s1022 = ssub.s32 %s30, 2
        // Predicated region
        $region117: #{ground_vqa_forward.3} parent=115 // pred_check
          %p1023 = pneg %p333
        $region118: #{ground_vqa_forward.3} parent=115 // pred_check_branch
          %1025 = sbr.rel (%p1023) target = $region120
        $region119: #{ground_vqa_forward.3} parent=115 // pred_region
          %s1026 = sand.u32 %s318, 1
          %s1027 = scalar_lea.sflag [#allocation4], %s1026
          %s1028 = sand.u32 %s318, 1
          %s1029 = smul.addr %s1028, 4
          %s1030 = scalar_lea.vmem [#allocation20], %s1029
          %1031 = dma.done %s1027, 64
        $region120: #{ground_vqa_forward.3} parent=115 // pred_fallthru
          _
      $region116: #{ground_vqa_forward.3} parent=5 // pred_fallthru
        _
    $region6: #{ground_vqa_forward.3} parent=1 // loop_footer
      %s34 = sadd.s32 1, %s30
    $region7: #{ground_vqa_forward.3} parent=1 // loop_footer_branch
      %29 = sbr.rel target = $region3
    $region8: #{ground_vqa_forward.3} parent=1 // loop_exit
      _
    %1032 = vsyncpa [#allocation3], 1
    %s1033 = scalar_lea.sflag [#allocation3], 1
    %1034 = vsyncpa %s1033, 1
    %1035 = vsyncpa [#allocation6], 1
    %1036 = vsyncpa [#allocation9], 1
    %s1037 = scalar_lea.sflag [#allocation9], 1
    %1038 = vsyncpa %s1037, 1
    %1039 = vsyncpa [#allocation12], 1
    %1040 = vsyncpa [#allocation15], 1
    %1041 = vsyncpa [#allocation18], 1
    %1042 = vsyncpa [#allocation4], 1
    %s1043 = scalar_lea.sflag [#allocation4], 1
    %1044 = vsyncpa %s1043, 1

</llo_original>
